<compile_context>
chip_gen: v7x
topology: tpu7x:2x2x1
jax: 0.10.0
libtpu: 0.0.40
codegen_flags: <defaults>
</compile_context>

<pallas_src>
import jax
import jax.numpy as jnp
from jax import lax
from jax.experimental import pallas as pl
from jax.experimental.pallas import tpu as pltpu

LANE = 128      # lane tile (last dim)
SUBLANE = 8     # f32 sublane tile (second-to-last dim)


def _round_up(x, m):
    return (x + m - 1) // m * m


def gru_classifier_kernel(ids_ref,      # (T*Bp, 1) int32 token ids, time-major, batch-padded
                          emb_ref,      # (Vp, Hp)  bf16 embedding table (zero-padded)
                          wih_ref,      # (Hp, 3Hp) bf16 fused [W_ir | W_iz | W_in] (pre-transposed)
                          bih_ref,      # (1, 3Hp)  f32 fused [b_ir+b_hr | b_iz+b_hz | b_in]
                          whh_ref,      # (Hp, 3Hp) bf16 fused [W_hr | W_hz | W_hn]
                          bhn_ref,      # (1, Hp)   f32 b_hn (must stay inside the r* term)
                          wfc_ref,      # (Hp, Op)  bf16 final Linear weight
                          bfc_ref,      # (1, Op)   f32 final Linear bias
                          out_ref,      # (Bp, Op)  f32 fc(h_T)
                          xproj_ref):   # VMEM scratch (T*Bp, 3Hp) f32 precomputed input gates
    tb = ids_ref.shape[0]
    vp, hp = emb_ref.shape
    bp = out_ref.shape[0]
    t_steps = tb // bp

    # ---- Pass 1: embedding lookup + input-side projections for ALL timesteps ----
    # one-hot(ids) @ emb selects embedding rows on the MXU (no gather lowering),
    # then one wide matmul precomputes every gate's input contribution + biases.
    eq = ids_ref[...] == lax.broadcasted_iota(jnp.int32, (tb, vp), 1)
    onehot = jnp.where(eq, 1.0, 0.0).astype(jnp.bfloat16)              # (T*Bp, Vp)
    emb_x = jnp.dot(onehot, emb_ref[...],
                    preferred_element_type=jnp.float32).astype(jnp.bfloat16)
    xproj_ref[...] = (jnp.dot(emb_x, wih_ref[...],
                              preferred_element_type=jnp.float32)
                      + bih_ref[...])                                   # (T*Bp, 3Hp) f32

    # ---- Pass 2: sequential GRU recurrence (one hidden-side matmul per step) ----
    whh = whh_ref[...]                                   # loop-invariant, hoisted
    bhn = jnp.broadcast_to(bhn_ref[...], (bp, hp))       # hoist broadcast out of loop

    def step(t, h):
        row = pl.multiple_of(t * bp, bp)
        xg = xproj_ref[pl.ds(row, bp), :]                               # (Bp, 3Hp) f32
        hg = jnp.dot(h.astype(jnp.bfloat16), whh,
                     preferred_element_type=jnp.float32)                # (Bp, 3Hp) f32
        # PyTorch GRU cell (gate order r, z, n):
        r = jax.nn.sigmoid(xg[:, :hp] + hg[:, :hp])
        z = jax.nn.sigmoid(xg[:, hp:2 * hp] + hg[:, hp:2 * hp])
        n = jnp.tanh(xg[:, 2 * hp:] + r * (hg[:, 2 * hp:] + bhn))
        return (1.0 - z) * n + z * h                                    # stays in vregs (f32)

    h0 = jnp.zeros((bp, hp), jnp.float32)                # _init_hidden: zeros
    h_final = lax.fori_loop(0, t_steps, step, h0, unroll=True)

    # ---- fc(hidden): (Bp, Hp) @ (Hp, Op) + b, lane-dense Op=128 output ----
    out_ref[...] = (jnp.dot(h_final.astype(jnp.bfloat16), wfc_ref[...],
                            preferred_element_type=jnp.float32)
                    + bfc_ref[...]).astype(out_ref.dtype)


def make_params(key, input_size, hidden_size, output_size):
    """Logical (unpadded) parameters mirroring the PyTorch module's layers.
    Weights bf16 (MXU native), biases / accumulation f32."""
    ks = jax.random.split(key, 14)
    H, O, V = hidden_size, output_size, input_size
    s = 1.0 / (H ** 0.5)
    u = lambda k, shape: jax.random.uniform(k, shape, jnp.float32, -s, s)
    return {
        # nn.Embedding(V, H)
        "embedding": jax.random.normal(ks[0], (V, H), jnp.float32).astype(jnp.bfloat16),
        # nn.GRU(H, H, n_layers=1); weights stored pre-transposed as (in, out) for x @ W
        "w_ir": u(ks[1], (H, H)).astype(jnp.bfloat16),
        "w_iz": u(ks[2], (H, H)).astype(jnp.bfloat16),
        "w_in": u(ks[3], (H, H)).astype(jnp.bfloat16),
        "w_hr": u(ks[4], (H, H)).astype(jnp.bfloat16),
        "w_hz": u(ks[5], (H, H)).astype(jnp.bfloat16),
        "w_hn": u(ks[6], (H, H)).astype(jnp.bfloat16),
        "b_ir": u(ks[7], (H,)), "b_iz": u(ks[8], (H,)), "b_in": u(ks[9], (H,)),
        "b_hr": u(ks[10], (H,)), "b_hz": u(ks[11], (H,)), "b_hn": u(ks[12], (H,)),
        # nn.Linear(H, O)
        "w_fc": u(ks[13], (H, O)).astype(jnp.bfloat16),
        "b_fc": jnp.zeros((O,), jnp.float32),
    }


def pack_kernel_params(p):
    """Pad to TPU tiles and fuse per-gate weights/biases for the kernel."""
    V, H = p["embedding"].shape
    O = p["w_fc"].shape[1]
    Vp, Hp, Op = _round_up(V, LANE), _round_up(H, LANE), _round_up(O, LANE)

    def pad2(a, rows, cols):
        return jnp.zeros((rows, cols), a.dtype).at[:a.shape[0], :a.shape[1]].set(a)

    pad_w = lambda w: pad2(w, Hp, Hp)                 # (H,H) -> (Hp,Hp), zero-padded
    pad_b = lambda b: pad2(b[None, :], 1, Hp)         # (H,)  -> (1,Hp)

    wih = jnp.concatenate([pad_w(p["w_ir"]), pad_w(p["w_iz"]), pad_w(p["w_in"])], axis=1)
    whh = jnp.concatenate([pad_w(p["w_hr"]), pad_w(p["w_hz"]), pad_w(p["w_hn"])], axis=1)
    # Biases that sit OUTSIDE the r* term fold into the precomputed input projection.
    bih = jnp.concatenate([pad_b(p["b_ir"] + p["b_hr"]),
                           pad_b(p["b_iz"] + p["b_hz"]),
                           pad_b(p["b_in"])], axis=1)
    return {
        "emb": pad2(p["embedding"], Vp, Hp),          # (Vp, Hp) bf16
        "wih": wih, "bih": bih, "whh": whh,           # (Hp,3Hp) bf16 / (1,3Hp) f32
        "bhn": pad_b(p["b_hn"]),                      # (1, Hp) f32
        "wfc": pad2(p["w_fc"], Hp, Op),               # (Hp, Op) bf16
        "bfc": pad2(p["b_fc"][None, :], 1, Op),       # (1, Op) f32
    }


def rnn_classifier_forward(kp, inputs, output_size):
    """inputs: (batch, seq) int32 token ids -> (n_layers=1, batch, output_size) f32."""
    B, T = inputs.shape
    _, Hp = kp["emb"].shape
    Op = kp["wfc"].shape[1]
    Bp = _round_up(max(B, 1), SUBLANE)

    # input.t() -> time-major ids; pad batch rows (with a valid id) to the sublane tile.
    ids = jnp.zeros((T, Bp), jnp.int32).at[:, :B].set(inputs.T.astype(jnp.int32))
    ids = ids.reshape(T * Bp, 1)

    vmem = pl.BlockSpec(memory_space=pltpu.MemorySpace.VMEM)
    # TODO(synk): for large batches add a batch-block grid axis marked "parallel"
    # (megacore on v7x); pointless at B=2 so everything runs in one grid step.
    out = pl.pallas_call(
        gru_classifier_kernel,
        out_shape=jax.ShapeDtypeStruct((Bp, Op), jnp.float32),
        in_specs=[vmem] * 8,
        out_specs=vmem,
        scratch_shapes=[pltpu.VMEM((T * Bp, 3 * Hp), jnp.float32)],
    )(ids, kp["emb"], kp["wih"], kp["bih"], kp["whh"], kp["bhn"],
      kp["wfc"], kp["bfc"])

    return out[:B, :output_size][None, :, :]          # (1, B, O), matches fc(hidden)


def reference_forward(p, inputs):
    """Pure-JAX reference: textbook PyTorch GRU + Linear equations with the same
    bf16-weight / f32-accumulation numerics as the kernel."""
    x_seq = jnp.take(p["embedding"], inputs.T, axis=0)     # (T, B, H) bf16
    B = inputs.shape[0]
    H = p["embedding"].shape[1]
    dot = lambda a, b: jnp.dot(a, b, preferred_element_type=jnp.float32)

    def step(h, x):
        hb = h.astype(jnp.bfloat16)
        r = jax.nn.sigmoid(dot(x, p["w_ir"]) + p["b_ir"] + dot(hb, p["w_hr"]) + p["b_hr"])
        z = jax.nn.sigmoid(dot(x, p["w_iz"]) + p["b_iz"] + dot(hb, p["w_hz"]) + p["b_hz"])
        n = jnp.tanh(dot(x, p["w_in"]) + p["b_in"] + r * (dot(hb, p["w_hn"]) + p["b_hn"]))
        return (1.0 - z) * n + z * h, None

    h0 = jnp.zeros((B, H), jnp.float32)
    h_T, _ = lax.scan(step, h0, x_seq)
    return (dot(h_T.astype(jnp.bfloat16), p["w_fc"]) + p["b_fc"])[None, :, :]


if __name__ == "__main__":
    # Shapes consistent with the module's forward:
    #   input_size (vocab)=16, hidden_size=32, output_size=8, batch=2, seq_len=8, n_layers=1.
    input_size, hidden_size, output_size = 16, 32, 8
    batch, seq_len = 2, 8

    key = jax.random.PRNGKey(0)
    pkey, xkey = jax.random.split(key)
    params = make_params(pkey, input_size, hidden_size, output_size)
    kparams = pack_kernel_params(params)
    x = jax.random.randint(xkey, (batch, seq_len), 0, input_size, dtype=jnp.int32)

    out = jax.block_until_ready(rnn_classifier_forward(kparams, x, output_size))
    ref = jax.block_until_ready(reference_forward(params, x))

    assert out.shape == (1, batch, output_size), out.shape
    assert jnp.allclose(out, ref, atol=1e-3, rtol=1e-3), (out, ref)

    print("KERNEL_OK")
</pallas_src>

<mosaic_0001>
module attributes {stable_mosaic.version = 11 : i64} {
  func.func @gru_classifier_kernel(%arg0: memref<64x1xi32, #tpu.memory_space<vmem>>, %arg1: memref<128x128xbf16, #tpu.memory_space<vmem>>, %arg2: memref<128x384xbf16, #tpu.memory_space<vmem>>, %arg3: memref<1x384xf32, #tpu.memory_space<vmem>>, %arg4: memref<128x384xbf16, #tpu.memory_space<vmem>>, %arg5: memref<1x128xf32, #tpu.memory_space<vmem>>, %arg6: memref<128x128xbf16, #tpu.memory_space<vmem>>, %arg7: memref<1x128xf32, #tpu.memory_space<vmem>>, %arg8: memref<8x128xf32, #tpu.memory_space<vmem>>, %arg9: memref<64x384xf32, #tpu.memory_space<vmem>>) attributes {dimension_semantics = [], scalar_prefetch = 0 : i64, scratch_operands = 1 : i64, tpu.core_type = #tpu.core_type<tc>} {
    %c0 = arith.constant 0 : index
    %c0_0 = arith.constant 0 : index
    %0 = vector.load %arg0[%c0, %c0_0] : memref<64x1xi32, #tpu.memory_space<vmem>>, vector<64x1xi32>
    %1 = tpu.iota {dimensions = array<i32: 1>} : vector<64x128xi32>
    %2 = vector.broadcast %0 : vector<64x1xi32> to vector<64x128xi32>
    %3 = arith.cmpi eq, %2, %1 : vector<64x128xi32>
    %cst = arith.constant 1.000000e+00 : f32
    %cst_1 = arith.constant 0.000000e+00 : f32
    %4 = vector.broadcast %cst : f32 to vector<64x128xf32>
    %5 = vector.broadcast %cst_1 : f32 to vector<64x128xf32>
    %6 = arith.select %3, %4, %5 : vector<64x128xi1>, vector<64x128xf32>
    %7 = arith.truncf %6 : vector<64x128xf32> to vector<64x128xbf16>
    %c0_2 = arith.constant 0 : index
    %c0_3 = arith.constant 0 : index
    %8 = vector.load %arg1[%c0_2, %c0_3] : memref<128x128xbf16, #tpu.memory_space<vmem>>, vector<128x128xbf16>
    %cst_4 = arith.constant dense<0.000000e+00> : vector<64x128xf32>
    %9 = tpu.matmul %7, %8, %cst_4 {dimension_numbers = #tpu.dot_dimension_numbers<[1], [0], [0], [1], [0, 0, 1, 1], [], []>} : vector<64x128xbf16>, vector<128x128xbf16>, vector<64x128xf32> -> vector<64x128xf32>
    %10 = arith.truncf %9 : vector<64x128xf32> to vector<64x128xbf16>
    %c0_5 = arith.constant 0 : index
    %c0_6 = arith.constant 0 : index
    %11 = vector.load %arg2[%c0_5, %c0_6] : memref<128x384xbf16, #tpu.memory_space<vmem>>, vector<128x384xbf16>
    %cst_7 = arith.constant dense<0.000000e+00> : vector<64x384xf32>
    %12 = tpu.matmul %10, %11, %cst_7 {dimension_numbers = #tpu.dot_dimension_numbers<[1], [0], [0], [1], [0, 0, 1, 1], [], []>} : vector<64x128xbf16>, vector<128x384xbf16>, vector<64x384xf32> -> vector<64x384xf32>
    %c0_8 = arith.constant 0 : index
    %c0_9 = arith.constant 0 : index
    %13 = vector.load %arg3[%c0_8, %c0_9] : memref<1x384xf32, #tpu.memory_space<vmem>>, vector<1x384xf32>
    %14 = vector.broadcast %13 : vector<1x384xf32> to vector<64x384xf32>
    %15 = arith.addf %12, %14 : vector<64x384xf32>
    %c0_10 = arith.constant 0 : index
    %c0_11 = arith.constant 0 : index
    %16 = vector.load %arg9[%c0_10, %c0_11] : memref<64x384xf32, #tpu.memory_space<vmem>>, vector<64x384xf32>
    tpu.vector_store %arg9[%c0_10, %c0_11], %15 {strides = array<i32>} : memref<64x384xf32, #tpu.memory_space<vmem>>, vector<64x384xf32>,
    %c0_12 = arith.constant 0 : index
    %c0_13 = arith.constant 0 : index
    %17 = vector.load %arg4[%c0_12, %c0_13] : memref<128x384xbf16, #tpu.memory_space<vmem>>, vector<128x384xbf16>
    %c0_14 = arith.constant 0 : index
    %c0_15 = arith.constant 0 : index
    %18 = vector.load %arg5[%c0_14, %c0_15] : memref<1x128xf32, #tpu.memory_space<vmem>>, vector<1x128xf32>
    %19 = vector.shape_cast %18 : vector<1x128xf32> to vector<1x128xf32>
    %20 = vector.broadcast %19 : vector<1x128xf32> to vector<8x128xf32>
    %cst_16 = arith.constant 0.000000e+00 : f32
    %21 = vector.broadcast %cst_16 : f32 to vector<8x128xf32>
    %c0_i32 = arith.constant 0 : i32
    %c8_i32 = arith.constant 8 : i32
    %22 = arith.muli %c0_i32, %c8_i32 : i32
    %23 = tpu.assume_multiple %22, 8 : i32
    %24 = arith.index_cast %23 : i32 to index
    %c0_17 = arith.constant 0 : index
    %25 = vector.load %arg9[%24, %c0_17] : memref<64x384xf32, #tpu.memory_space<vmem>>, vector<8x384xf32>
    %26 = arith.truncf %21 : vector<8x128xf32> to vector<8x128xbf16>
    %cst_18 = arith.constant dense<0.000000e+00> : vector<8x384xf32>
    %27 = tpu.matmul %26, %17, %cst_18 {dimension_numbers = #tpu.dot_dimension_numbers<[1], [0], [0], [1], [0, 0, 1, 1], [], []>} : vector<8x128xbf16>, vector<128x384xbf16>, vector<8x384xf32> -> vector<8x384xf32>
    %28 = vector.extract_strided_slice %25 {offsets = [0, 0], sizes = [8, 128], strides = [1, 1]} : vector<8x384xf32> to vector<8x128xf32>
    %29 = vector.extract_strided_slice %27 {offsets = [0, 0], sizes = [8, 128], strides = [1, 1]} : vector<8x384xf32> to vector<8x128xf32>
    %30 = arith.addf %28, %29 : vector<8x128xf32>
    %31 = arith.negf %30 : vector<8x128xf32>
    %32 = math.exp %31 : vector<8x128xf32>
    %cst_19 = arith.constant 1.000000e+00 : f32
    %33 = vector.broadcast %cst_19 : f32 to vector<8x128xf32>
    %34 = arith.addf %33, %32 : vector<8x128xf32>
    %35 = arith.divf %33, %34 : vector<8x128xf32>
    %36 = vector.extract_strided_slice %25 {offsets = [0, 128], sizes = [8, 128], strides = [1, 1]} : vector<8x384xf32> to vector<8x128xf32>
    %37 = vector.extract_strided_slice %27 {offsets = [0, 128], sizes = [8, 128], strides = [1, 1]} : vector<8x384xf32> to vector<8x128xf32>
    %38 = arith.addf %36, %37 : vector<8x128xf32>
    %39 = arith.negf %38 : vector<8x128xf32>
    %40 = math.exp %39 : vector<8x128xf32>
    %cst_20 = arith.constant 1.000000e+00 : f32
    %41 = vector.broadcast %cst_20 : f32 to vector<8x128xf32>
    %42 = arith.addf %41, %40 : vector<8x128xf32>
    %43 = arith.divf %41, %42 : vector<8x128xf32>
    %44 = vector.extract_strided_slice %25 {offsets = [0, 256], sizes = [8, 128], strides = [1, 1]} : vector<8x384xf32> to vector<8x128xf32>
    %45 = vector.extract_strided_slice %27 {offsets = [0, 256], sizes = [8, 128], strides = [1, 1]} : vector<8x384xf32> to vector<8x128xf32>
    %46 = arith.addf %45, %20 : vector<8x128xf32>
    %47 = arith.mulf %35, %46 : vector<8x128xf32>
    %48 = arith.addf %44, %47 : vector<8x128xf32>
    %49 = math.tanh %48 : vector<8x128xf32>
    %cst_21 = arith.constant 1.000000e+00 : f32
    %50 = vector.broadcast %cst_21 : f32 to vector<8x128xf32>
    %51 = arith.subf %50, %43 : vector<8x128xf32>
    %52 = arith.mulf %51, %49 : vector<8x128xf32>
    %53 = arith.mulf %43, %21 : vector<8x128xf32>
    %54 = arith.addf %52, %53 : vector<8x128xf32>
    %c1_i32 = arith.constant 1 : i32
    %c8_i32_22 = arith.constant 8 : i32
    %55 = arith.muli %c1_i32, %c8_i32_22 : i32
    %56 = tpu.assume_multiple %55, 8 : i32
    %57 = arith.index_cast %56 : i32 to index
    %c0_23 = arith.constant 0 : index
    %58 = vector.load %arg9[%57, %c0_23] : memref<64x384xf32, #tpu.memory_space<vmem>>, vector<8x384xf32>
    %59 = arith.truncf %54 : vector<8x128xf32> to vector<8x128xbf16>
    %cst_24 = arith.constant dense<0.000000e+00> : vector<8x384xf32>
    %60 = tpu.matmul %59, %17, %cst_24 {dimension_numbers = #tpu.dot_dimension_numbers<[1], [0], [0], [1], [0, 0, 1, 1], [], []>} : vector<8x128xbf16>, vector<128x384xbf16>, vector<8x384xf32> -> vector<8x384xf32>
    %61 = vector.extract_strided_slice %58 {offsets = [0, 0], sizes = [8, 128], strides = [1, 1]} : vector<8x384xf32> to vector<8x128xf32>
    %62 = vector.extract_strided_slice %60 {offsets = [0, 0], sizes = [8, 128], strides = [1, 1]} : vector<8x384xf32> to vector<8x128xf32>
    %63 = arith.addf %61, %62 : vector<8x128xf32>
    %64 = arith.negf %63 : vector<8x128xf32>
    %65 = math.exp %64 : vector<8x128xf32>
    %cst_25 = arith.constant 1.000000e+00 : f32
    %66 = vector.broadcast %cst_25 : f32 to vector<8x128xf32>
    %67 = arith.addf %66, %65 : vector<8x128xf32>
    %68 = arith.divf %66, %67 : vector<8x128xf32>
    %69 = vector.extract_strided_slice %58 {offsets = [0, 128], sizes = [8, 128], strides = [1, 1]} : vector<8x384xf32> to vector<8x128xf32>
    %70 = vector.extract_strided_slice %60 {offsets = [0, 128], sizes = [8, 128], strides = [1, 1]} : vector<8x384xf32> to vector<8x128xf32>
    %71 = arith.addf %69, %70 : vector<8x128xf32>
    %72 = arith.negf %71 : vector<8x128xf32>
    %73 = math.exp %72 : vector<8x128xf32>
    %cst_26 = arith.constant 1.000000e+00 : f32
    %74 = vector.broadcast %cst_26 : f32 to vector<8x128xf32>
    %75 = arith.addf %74, %73 : vector<8x128xf32>
    %76 = arith.divf %74, %75 : vector<8x128xf32>
    %77 = vector.extract_strided_slice %58 {offsets = [0, 256], sizes = [8, 128], strides = [1, 1]} : vector<8x384xf32> to vector<8x128xf32>
    %78 = vector.extract_strided_slice %60 {offsets = [0, 256], sizes = [8, 128], strides = [1, 1]} : vector<8x384xf32> to vector<8x128xf32>
    %79 = arith.addf %78, %20 : vector<8x128xf32>
    %80 = arith.mulf %68, %79 : vector<8x128xf32>
    %81 = arith.addf %77, %80 : vector<8x128xf32>
    %82 = math.tanh %81 : vector<8x128xf32>
    %cst_27 = arith.constant 1.000000e+00 : f32
    %83 = vector.broadcast %cst_27 : f32 to vector<8x128xf32>
    %84 = arith.subf %83, %76 : vector<8x128xf32>
    %85 = arith.mulf %84, %82 : vector<8x128xf32>
    %86 = arith.mulf %76, %54 : vector<8x128xf32>
    %87 = arith.addf %85, %86 : vector<8x128xf32>
    %c2_i32 = arith.constant 2 : i32
    %c8_i32_28 = arith.constant 8 : i32
    %88 = arith.muli %c2_i32, %c8_i32_28 : i32
    %89 = tpu.assume_multiple %88, 8 : i32
    %90 = arith.index_cast %89 : i32 to index
    %c0_29 = arith.constant 0 : index
    %91 = vector.load %arg9[%90, %c0_29] : memref<64x384xf32, #tpu.memory_space<vmem>>, vector<8x384xf32>
    %92 = arith.truncf %87 : vector<8x128xf32> to vector<8x128xbf16>
    %cst_30 = arith.constant dense<0.000000e+00> : vector<8x384xf32>
    %93 = tpu.matmul %92, %17, %cst_30 {dimension_numbers = #tpu.dot_dimension_numbers<[1], [0], [0], [1], [0, 0, 1, 1], [], []>} : vector<8x128xbf16>, vector<128x384xbf16>, vector<8x384xf32> -> vector<8x384xf32>
    %94 = vector.extract_strided_slice %91 {offsets = [0, 0], sizes = [8, 128], strides = [1, 1]} : vector<8x384xf32> to vector<8x128xf32>
    %95 = vector.extract_strided_slice %93 {offsets = [0, 0], sizes = [8, 128], strides = [1, 1]} : vector<8x384xf32> to vector<8x128xf32>
    %96 = arith.addf %94, %95 : vector<8x128xf32>
    %97 = arith.negf %96 : vector<8x128xf32>
    %98 = math.exp %97 : vector<8x128xf32>
    %cst_31 = arith.constant 1.000000e+00 : f32
    %99 = vector.broadcast %cst_31 : f32 to vector<8x128xf32>
    %100 = arith.addf %99, %98 : vector<8x128xf32>
    %101 = arith.divf %99, %100 : vector<8x128xf32>
    %102 = vector.extract_strided_slice %91 {offsets = [0, 128], sizes = [8, 128], strides = [1, 1]} : vector<8x384xf32> to vector<8x128xf32>
    %103 = vector.extract_strided_slice %93 {offsets = [0, 128], sizes = [8, 128], strides = [1, 1]} : vector<8x384xf32> to vector<8x128xf32>
    %104 = arith.addf %102, %103 : vector<8x128xf32>
    %105 = arith.negf %104 : vector<8x128xf32>
    %106 = math.exp %105 : vector<8x128xf32>
    %cst_32 = arith.constant 1.000000e+00 : f32
    %107 = vector.broadcast %cst_32 : f32 to vector<8x128xf32>
    %108 = arith.addf %107, %106 : vector<8x128xf32>
    %109 = arith.divf %107, %108 : vector<8x128xf32>
    %110 = vector.extract_strided_slice %91 {offsets = [0, 256], sizes = [8, 128], strides = [1, 1]} : vector<8x384xf32> to vector<8x128xf32>
    %111 = vector.extract_strided_slice %93 {offsets = [0, 256], sizes = [8, 128], strides = [1, 1]} : vector<8x384xf32> to vector<8x128xf32>
    %112 = arith.addf %111, %20 : vector<8x128xf32>
    %113 = arith.mulf %101, %112 : vector<8x128xf32>
    %114 = arith.addf %110, %113 : vector<8x128xf32>
    %115 = math.tanh %114 : vector<8x128xf32>
    %cst_33 = arith.constant 1.000000e+00 : f32
    %116 = vector.broadcast %cst_33 : f32 to vector<8x128xf32>
    %117 = arith.subf %116, %109 : vector<8x128xf32>
    %118 = arith.mulf %117, %115 : vector<8x128xf32>
    %119 = arith.mulf %109, %87 : vector<8x128xf32>
    %120 = arith.addf %118, %119 : vector<8x128xf32>
    %c3_i32 = arith.constant 3 : i32
    %c8_i32_34 = arith.constant 8 : i32
    %121 = arith.muli %c3_i32, %c8_i32_34 : i32
    %122 = tpu.assume_multiple %121, 8 : i32
    %123 = arith.index_cast %122 : i32 to index
    %c0_35 = arith.constant 0 : index
    %124 = vector.load %arg9[%123, %c0_35] : memref<64x384xf32, #tpu.memory_space<vmem>>, vector<8x384xf32>
    %125 = arith.truncf %120 : vector<8x128xf32> to vector<8x128xbf16>
    %cst_36 = arith.constant dense<0.000000e+00> : vector<8x384xf32>
    %126 = tpu.matmul %125, %17, %cst_36 {dimension_numbers = #tpu.dot_dimension_numbers<[1], [0], [0], [1], [0, 0, 1, 1], [], []>} : vector<8x128xbf16>, vector<128x384xbf16>, vector<8x384xf32> -> vector<8x384xf32>
    %127 = vector.extract_strided_slice %124 {offsets = [0, 0], sizes = [8, 128], strides = [1, 1]} : vector<8x384xf32> to vector<8x128xf32>
    %128 = vector.extract_strided_slice %126 {offsets = [0, 0], sizes = [8, 128], strides = [1, 1]} : vector<8x384xf32> to vector<8x128xf32>
    %129 = arith.addf %127, %128 : vector<8x128xf32>
    %130 = arith.negf %129 : vector<8x128xf32>
    %131 = math.exp %130 : vector<8x128xf32>
    %cst_37 = arith.constant 1.000000e+00 : f32
    %132 = vector.broadcast %cst_37 : f32 to vector<8x128xf32>
    %133 = arith.addf %132, %131 : vector<8x128xf32>
    %134 = arith.divf %132, %133 : vector<8x128xf32>
    %135 = vector.extract_strided_slice %124 {offsets = [0, 128], sizes = [8, 128], strides = [1, 1]} : vector<8x384xf32> to vector<8x128xf32>
    %136 = vector.extract_strided_slice %126 {offsets = [0, 128], sizes = [8, 128], strides = [1, 1]} : vector<8x384xf32> to vector<8x128xf32>
    %137 = arith.addf %135, %136 : vector<8x128xf32>
    %138 = arith.negf %137 : vector<8x128xf32>
    %139 = math.exp %138 : vector<8x128xf32>
    %cst_38 = arith.constant 1.000000e+00 : f32
    %140 = vector.broadcast %cst_38 : f32 to vector<8x128xf32>
    %141 = arith.addf %140, %139 : vector<8x128xf32>
    %142 = arith.divf %140, %141 : vector<8x128xf32>
    %143 = vector.extract_strided_slice %124 {offsets = [0, 256], sizes = [8, 128], strides = [1, 1]} : vector<8x384xf32> to vector<8x128xf32>
    %144 = vector.extract_strided_slice %126 {offsets = [0, 256], sizes = [8, 128], strides = [1, 1]} : vector<8x384xf32> to vector<8x128xf32>
    %145 = arith.addf %144, %20 : vector<8x128xf32>
    %146 = arith.mulf %134, %145 : vector<8x128xf32>
    %147 = arith.addf %143, %146 : vector<8x128xf32>
    %148 = math.tanh %147 : vector<8x128xf32>
    %cst_39 = arith.constant 1.000000e+00 : f32
    %149 = vector.broadcast %cst_39 : f32 to vector<8x128xf32>
    %150 = arith.subf %149, %142 : vector<8x128xf32>
    %151 = arith.mulf %150, %148 : vector<8x128xf32>
    %152 = arith.mulf %142, %120 : vector<8x128xf32>
    %153 = arith.addf %151, %152 : vector<8x128xf32>
    %c4_i32 = arith.constant 4 : i32
    %c8_i32_40 = arith.constant 8 : i32
    %154 = arith.muli %c4_i32, %c8_i32_40 : i32
    %155 = tpu.assume_multiple %154, 8 : i32
    %156 = arith.index_cast %155 : i32 to index
    %c0_41 = arith.constant 0 : index
    %157 = vector.load %arg9[%156, %c0_41] : memref<64x384xf32, #tpu.memory_space<vmem>>, vector<8x384xf32>
    %158 = arith.truncf %153 : vector<8x128xf32> to vector<8x128xbf16>
    %cst_42 = arith.constant dense<0.000000e+00> : vector<8x384xf32>
    %159 = tpu.matmul %158, %17, %cst_42 {dimension_numbers = #tpu.dot_dimension_numbers<[1], [0], [0], [1], [0, 0, 1, 1], [], []>} : vector<8x128xbf16>, vector<128x384xbf16>, vector<8x384xf32> -> vector<8x384xf32>
    %160 = vector.extract_strided_slice %157 {offsets = [0, 0], sizes = [8, 128], strides = [1, 1]} : vector<8x384xf32> to vector<8x128xf32>
    %161 = vector.extract_strided_slice %159 {offsets = [0, 0], sizes = [8, 128], strides = [1, 1]} : vector<8x384xf32> to vector<8x128xf32>
    %162 = arith.addf %160, %161 : vector<8x128xf32>
    %163 = arith.negf %162 : vector<8x128xf32>
    %164 = math.exp %163 : vector<8x128xf32>
    %cst_43 = arith.constant 1.000000e+00 : f32
    %165 = vector.broadcast %cst_43 : f32 to vector<8x128xf32>
    %166 = arith.addf %165, %164 : vector<8x128xf32>
    %167 = arith.divf %165, %166 : vector<8x128xf32>
    %168 = vector.extract_strided_slice %157 {offsets = [0, 128], sizes = [8, 128], strides = [1, 1]} : vector<8x384xf32> to vector<8x128xf32>
    %169 = vector.extract_strided_slice %159 {offsets = [0, 128], sizes = [8, 128], strides = [1, 1]} : vector<8x384xf32> to vector<8x128xf32>
    %170 = arith.addf %168, %169 : vector<8x128xf32>
    %171 = arith.negf %170 : vector<8x128xf32>
    %172 = math.exp %171 : vector<8x128xf32>
    %cst_44 = arith.constant 1.000000e+00 : f32
    %173 = vector.broadcast %cst_44 : f32 to vector<8x128xf32>
    %174 = arith.addf %173, %172 : vector<8x128xf32>
    %175 = arith.divf %173, %174 : vector<8x128xf32>
    %176 = vector.extract_strided_slice %157 {offsets = [0, 256], sizes = [8, 128], strides = [1, 1]} : vector<8x384xf32> to vector<8x128xf32>
    %177 = vector.extract_strided_slice %159 {offsets = [0, 256], sizes = [8, 128], strides = [1, 1]} : vector<8x384xf32> to vector<8x128xf32>
    %178 = arith.addf %177, %20 : vector<8x128xf32>
    %179 = arith.mulf %167, %178 : vector<8x128xf32>
    %180 = arith.addf %176, %179 : vector<8x128xf32>
    %181 = math.tanh %180 : vector<8x128xf32>
    %cst_45 = arith.constant 1.000000e+00 : f32
    %182 = vector.broadcast %cst_45 : f32 to vector<8x128xf32>
    %183 = arith.subf %182, %175 : vector<8x128xf32>
    %184 = arith.mulf %183, %181 : vector<8x128xf32>
    %185 = arith.mulf %175, %153 : vector<8x128xf32>
    %186 = arith.addf %184, %185 : vector<8x128xf32>
    %c5_i32 = arith.constant 5 : i32
    %c8_i32_46 = arith.constant 8 : i32
    %187 = arith.muli %c5_i32, %c8_i32_46 : i32
    %188 = tpu.assume_multiple %187, 8 : i32
    %189 = arith.index_cast %188 : i32 to index
    %c0_47 = arith.constant 0 : index
    %190 = vector.load %arg9[%189, %c0_47] : memref<64x384xf32, #tpu.memory_space<vmem>>, vector<8x384xf32>
    %191 = arith.truncf %186 : vector<8x128xf32> to vector<8x128xbf16>
    %cst_48 = arith.constant dense<0.000000e+00> : vector<8x384xf32>
    %192 = tpu.matmul %191, %17, %cst_48 {dimension_numbers = #tpu.dot_dimension_numbers<[1], [0], [0], [1], [0, 0, 1, 1], [], []>} : vector<8x128xbf16>, vector<128x384xbf16>, vector<8x384xf32> -> vector<8x384xf32>
    %193 = vector.extract_strided_slice %190 {offsets = [0, 0], sizes = [8, 128], strides = [1, 1]} : vector<8x384xf32> to vector<8x128xf32>
    %194 = vector.extract_strided_slice %192 {offsets = [0, 0], sizes = [8, 128], strides = [1, 1]} : vector<8x384xf32> to vector<8x128xf32>
    %195 = arith.addf %193, %194 : vector<8x128xf32>
    %196 = arith.negf %195 : vector<8x128xf32>
    %197 = math.exp %196 : vector<8x128xf32>
    %cst_49 = arith.constant 1.000000e+00 : f32
    %198 = vector.broadcast %cst_49 : f32 to vector<8x128xf32>
    %199 = arith.addf %198, %197 : vector<8x128xf32>
    %200 = arith.divf %198, %199 : vector<8x128xf32>
    %201 = vector.extract_strided_slice %190 {offsets = [0, 128], sizes = [8, 128], strides = [1, 1]} : vector<8x384xf32> to vector<8x128xf32>
    %202 = vector.extract_strided_slice %192 {offsets = [0, 128], sizes = [8, 128], strides = [1, 1]} : vector<8x384xf32> to vector<8x128xf32>
    %203 = arith.addf %201, %202 : vector<8x128xf32>
    %204 = arith.negf %203 : vector<8x128xf32>
    %205 = math.exp %204 : vector<8x128xf32>
    %cst_50 = arith.constant 1.000000e+00 : f32
    %206 = vector.broadcast %cst_50 : f32 to vector<8x128xf32>
    %207 = arith.addf %206, %205 : vector<8x128xf32>
    %208 = arith.divf %206, %207 : vector<8x128xf32>
    %209 = vector.extract_strided_slice %190 {offsets = [0, 256], sizes = [8, 128], strides = [1, 1]} : vector<8x384xf32> to vector<8x128xf32>
    %210 = vector.extract_strided_slice %192 {offsets = [0, 256], sizes = [8, 128], strides = [1, 1]} : vector<8x384xf32> to vector<8x128xf32>
    %211 = arith.addf %210, %20 : vector<8x128xf32>
    %212 = arith.mulf %200, %211 : vector<8x128xf32>
    %213 = arith.addf %209, %212 : vector<8x128xf32>
    %214 = math.tanh %213 : vector<8x128xf32>
    %cst_51 = arith.constant 1.000000e+00 : f32
    %215 = vector.broadcast %cst_51 : f32 to vector<8x128xf32>
    %216 = arith.subf %215, %208 : vector<8x128xf32>
    %217 = arith.mulf %216, %214 : vector<8x128xf32>
    %218 = arith.mulf %208, %186 : vector<8x128xf32>
    %219 = arith.addf %217, %218 : vector<8x128xf32>
    %c6_i32 = arith.constant 6 : i32
    %c8_i32_52 = arith.constant 8 : i32
    %220 = arith.muli %c6_i32, %c8_i32_52 : i32
    %221 = tpu.assume_multiple %220, 8 : i32
    %222 = arith.index_cast %221 : i32 to index
    %c0_53 = arith.constant 0 : index
    %223 = vector.load %arg9[%222, %c0_53] : memref<64x384xf32, #tpu.memory_space<vmem>>, vector<8x384xf32>
    %224 = arith.truncf %219 : vector<8x128xf32> to vector<8x128xbf16>
    %cst_54 = arith.constant dense<0.000000e+00> : vector<8x384xf32>
    %225 = tpu.matmul %224, %17, %cst_54 {dimension_numbers = #tpu.dot_dimension_numbers<[1], [0], [0], [1], [0, 0, 1, 1], [], []>} : vector<8x128xbf16>, vector<128x384xbf16>, vector<8x384xf32> -> vector<8x384xf32>
    %226 = vector.extract_strided_slice %223 {offsets = [0, 0], sizes = [8, 128], strides = [1, 1]} : vector<8x384xf32> to vector<8x128xf32>
    %227 = vector.extract_strided_slice %225 {offsets = [0, 0], sizes = [8, 128], strides = [1, 1]} : vector<8x384xf32> to vector<8x128xf32>
    %228 = arith.addf %226, %227 : vector<8x128xf32>
    %229 = arith.negf %228 : vector<8x128xf32>
    %230 = math.exp %229 : vector<8x128xf32>
    %cst_55 = arith.constant 1.000000e+00 : f32
    %231 = vector.broadcast %cst_55 : f32 to vector<8x128xf32>
    %232 = arith.addf %231, %230 : vector<8x128xf32>
    %233 = arith.divf %231, %232 : vector<8x128xf32>
    %234 = vector.extract_strided_slice %223 {offsets = [0, 128], sizes = [8, 128], strides = [1, 1]} : vector<8x384xf32> to vector<8x128xf32>
    %235 = vector.extract_strided_slice %225 {offsets = [0, 128], sizes = [8, 128], strides = [1, 1]} : vector<8x384xf32> to vector<8x128xf32>
    %236 = arith.addf %234, %235 : vector<8x128xf32>
    %237 = arith.negf %236 : vector<8x128xf32>
    %238 = math.exp %237 : vector<8x128xf32>
    %cst_56 = arith.constant 1.000000e+00 : f32
    %239 = vector.broadcast %cst_56 : f32 to vector<8x128xf32>
    %240 = arith.addf %239, %238 : vector<8x128xf32>
    %241 = arith.divf %239, %240 : vector<8x128xf32>
    %242 = vector.extract_strided_slice %223 {offsets = [0, 256], sizes = [8, 128], strides = [1, 1]} : vector<8x384xf32> to vector<8x128xf32>
    %243 = vector.extract_strided_slice %225 {offsets = [0, 256], sizes = [8, 128], strides = [1, 1]} : vector<8x384xf32> to vector<8x128xf32>
    %244 = arith.addf %243, %20 : vector<8x128xf32>
    %245 = arith.mulf %233, %244 : vector<8x128xf32>
    %246 = arith.addf %242, %245 : vector<8x128xf32>
    %247 = math.tanh %246 : vector<8x128xf32>
    %cst_57 = arith.constant 1.000000e+00 : f32
    %248 = vector.broadcast %cst_57 : f32 to vector<8x128xf32>
    %249 = arith.subf %248, %241 : vector<8x128xf32>
    %250 = arith.mulf %249, %247 : vector<8x128xf32>
    %251 = arith.mulf %241, %219 : vector<8x128xf32>
    %252 = arith.addf %250, %251 : vector<8x128xf32>
    %c7_i32 = arith.constant 7 : i32
    %c8_i32_58 = arith.constant 8 : i32
    %253 = arith.muli %c7_i32, %c8_i32_58 : i32
    %254 = tpu.assume_multiple %253, 8 : i32
    %255 = arith.index_cast %254 : i32 to index
    %c0_59 = arith.constant 0 : index
    %256 = vector.load %arg9[%255, %c0_59] : memref<64x384xf32, #tpu.memory_space<vmem>>, vector<8x384xf32>
    %257 = arith.truncf %252 : vector<8x128xf32> to vector<8x128xbf16>
    %cst_60 = arith.constant dense<0.000000e+00> : vector<8x384xf32>
    %258 = tpu.matmul %257, %17, %cst_60 {dimension_numbers = #tpu.dot_dimension_numbers<[1], [0], [0], [1], [0, 0, 1, 1], [], []>} : vector<8x128xbf16>, vector<128x384xbf16>, vector<8x384xf32> -> vector<8x384xf32>
    %259 = vector.extract_strided_slice %256 {offsets = [0, 0], sizes = [8, 128], strides = [1, 1]} : vector<8x384xf32> to vector<8x128xf32>
    %260 = vector.extract_strided_slice %258 {offsets = [0, 0], sizes = [8, 128], strides = [1, 1]} : vector<8x384xf32> to vector<8x128xf32>
    %261 = arith.addf %259, %260 : vector<8x128xf32>
    %262 = arith.negf %261 : vector<8x128xf32>
    %263 = math.exp %262 : vector<8x128xf32>
    %cst_61 = arith.constant 1.000000e+00 : f32
    %264 = vector.broadcast %cst_61 : f32 to vector<8x128xf32>
    %265 = arith.addf %264, %263 : vector<8x128xf32>
    %266 = arith.divf %264, %265 : vector<8x128xf32>
    %267 = vector.extract_strided_slice %256 {offsets = [0, 128], sizes = [8, 128], strides = [1, 1]} : vector<8x384xf32> to vector<8x128xf32>
    %268 = vector.extract_strided_slice %258 {offsets = [0, 128], sizes = [8, 128], strides = [1, 1]} : vector<8x384xf32> to vector<8x128xf32>
    %269 = arith.addf %267, %268 : vector<8x128xf32>
    %270 = arith.negf %269 : vector<8x128xf32>
    %271 = math.exp %270 : vector<8x128xf32>
    %cst_62 = arith.constant 1.000000e+00 : f32
    %272 = vector.broadcast %cst_62 : f32 to vector<8x128xf32>
    %273 = arith.addf %272, %271 : vector<8x128xf32>
    %274 = arith.divf %272, %273 : vector<8x128xf32>
    %275 = vector.extract_strided_slice %256 {offsets = [0, 256], sizes = [8, 128], strides = [1, 1]} : vector<8x384xf32> to vector<8x128xf32>
    %276 = vector.extract_strided_slice %258 {offsets = [0, 256], sizes = [8, 128], strides = [1, 1]} : vector<8x384xf32> to vector<8x128xf32>
    %277 = arith.addf %276, %20 : vector<8x128xf32>
    %278 = arith.mulf %266, %277 : vector<8x128xf32>
    %279 = arith.addf %275, %278 : vector<8x128xf32>
    %280 = math.tanh %279 : vector<8x128xf32>
    %cst_63 = arith.constant 1.000000e+00 : f32
    %281 = vector.broadcast %cst_63 : f32 to vector<8x128xf32>
    %282 = arith.subf %281, %274 : vector<8x128xf32>
    %283 = arith.mulf %282, %280 : vector<8x128xf32>
    %284 = arith.mulf %274, %252 : vector<8x128xf32>
    %285 = arith.addf %283, %284 : vector<8x128xf32>
    %c8_i32_64 = arith.constant 8 : i32
    %286 = arith.truncf %285 : vector<8x128xf32> to vector<8x128xbf16>
    %c0_65 = arith.constant 0 : index
    %c0_66 = arith.constant 0 : index
    %287 = vector.load %arg6[%c0_65, %c0_66] : memref<128x128xbf16, #tpu.memory_space<vmem>>, vector<128x128xbf16>
    %cst_67 = arith.constant dense<0.000000e+00> : vector<8x128xf32>
    %288 = tpu.matmul %286, %287, %cst_67 {dimension_numbers = #tpu.dot_dimension_numbers<[1], [0], [0], [1], [0, 0, 1, 1], [], []>} : vector<8x128xbf16>, vector<128x128xbf16>, vector<8x128xf32> -> vector<8x128xf32>
    %c0_68 = arith.constant 0 : index
    %c0_69 = arith.constant 0 : index
    %289 = vector.load %arg7[%c0_68, %c0_69] : memref<1x128xf32, #tpu.memory_space<vmem>>, vector<1x128xf32>
    %290 = vector.broadcast %289 : vector<1x128xf32> to vector<8x128xf32>
    %291 = arith.addf %288, %290 : vector<8x128xf32>
    %c0_70 = arith.constant 0 : index
    %c0_71 = arith.constant 0 : index
    %292 = vector.load %arg8[%c0_70, %c0_71] : memref<8x128xf32, #tpu.memory_space<vmem>>, vector<8x128xf32>
    tpu.vector_store %arg8[%c0_70, %c0_71], %291 {strides = array<i32>} : memref<8x128xf32, #tpu.memory_space<vmem>>, vector<8x128xf32>,
    return
  }
}

</mosaic_0001>

<llo_original>
// kernel: tpu_custom_call.1
$region0: #{tpu_custom_call.1}
  #allocation0 [shape = 'u32[]', space=smem, size = 0x4, offset = 0x4, fixed_abs, tag = 'smem constant byte address 0x4 - core index']
  #allocation1 [shape = 'u32[144,128]{1,0:T(1,128)}', space=vmem, size = 0x12000, scoped, tag = 'internal scratch']
  #allocation2 [shape = 'f32[64,384]{1,0:T(8,128)}', space=vmem, size = 0x18000, scoped, tag = 'scratch operand']
  %s0 = inlined_call_operand.vmem [shape: s32[64,1], index: 0, kind: input, shape index: {}]
  %s1 = inlined_call_operand.vmem [shape: bf16[128,128], index: 1, kind: input, shape index: {}]
  %s2 = inlined_call_operand.hbm [shape: bf16[128,384], index: 2, kind: input, shape index: {}]
  %s3 = inlined_call_operand.vmem [shape: f32[1,384], index: 3, kind: input, shape index: {}]
  %s4 = inlined_call_operand.hbm [shape: bf16[128,384], index: 4, kind: input, shape index: {}]
  %s5 = inlined_call_operand.vmem [shape: f32[1,128], index: 5, kind: input, shape index: {}]
  %s6 = inlined_call_operand.hbm [shape: bf16[128,128], index: 6, kind: input, shape index: {}]
  %s7 = inlined_call_operand.vmem [shape: f32[1,128], index: 7, kind: input, shape index: {}]
  %s8 = inlined_call_operand.hbm [shape: f32[8,128], index: 8, kind: output, shape index: {}]
  %s9 = sld [smem:[#allocation0]]
  $region54: #{tpu_custom_call.1} parent=0
    _
  %s11 = ssub.s32 1, %s9
  %s12 = scalar_select 0, %s11, %s9
  $region1: #{tpu_custom_call.1} parent=0
    #allocation3 [shape = 'u8[98304]{0}', space=vmem, size = 0x18000, scoped, tag = 'input window, operand 2, single buffered']
    #allocation4 [shape = 's32[1]{0}', space=sflag, size = 0x4, scoped, tag = 'scoped memory for tpu_custom_call.1']
    #allocation5 [shape = 's32[1]{0}', space=sflag, size = 0x4, scoped, tag = 'scoped memory for tpu_custom_call.1']
    #allocation6 [shape = 'u8[98304]{0}', space=vmem, size = 0x18000, scoped, tag = 'input window, operand 4, single buffered']
    #allocation7 [shape = 's32[1]{0}', space=sflag, size = 0x4, scoped, tag = 'scoped memory for tpu_custom_call.1']
    #allocation8 [shape = 'u8[32768]{0}', space=vmem, size = 0x8000, scoped, tag = 'input window, operand 6, single buffered']
    #allocation9 [shape = 'u8[4096]{0}', space=vmem, size = 0x1000, scoped, tag = 'output window, operand 0, single buffered']
    %13 = vsyncpa [#allocation4], 0
    %14 = vsyncpa [#allocation7], 0
    %15 = vsyncpa [#allocation5], 0
    // Predicated region
    $region2: #{tpu_custom_call.1} parent=1 // pred_check
      _
    $region3: #{tpu_custom_call.1} parent=1 // pred_check_branch
      %17 = sbr.rel (0) target = $region5
    $region4: #{tpu_custom_call.1} parent=1 // pred_region
      _
    $region5: #{tpu_custom_call.1} parent=1 // pred_fallthru
      _
    // Predicated region
    $region6: #{tpu_custom_call.1} parent=1 // pred_check
      _
    $region7: #{tpu_custom_call.1} parent=1 // pred_check_branch
      %19 = sbr.rel (0) target = $region9
    $region8: #{tpu_custom_call.1} parent=1 // pred_region
      _
    $region9: #{tpu_custom_call.1} parent=1 // pred_fallthru
      _
    // Predicated region
    $region10: #{tpu_custom_call.1} parent=1 // pred_check
      _
    $region11: #{tpu_custom_call.1} parent=1 // pred_check_branch
      %21 = sbr.rel (0) target = $region13
    $region12: #{tpu_custom_call.1} parent=1 // pred_region
      %s23 = ssub.s32 3072, 3072
      %24 = vsyncadd [#allocation4], %s23
      %s25 = sshll.u32 [#allocation3], 4
      %s26 = int_to_ptr.vmem [resolvable:$true] %s25
      %31 = dma.hbm_to_vmem [thread:$0]  %s2, 3072, %s26, [#allocation4], 192, 192, 12
    $region13: #{tpu_custom_call.1} parent=1 // pred_fallthru
      _
    // Predicated region
    $region14: #{tpu_custom_call.1} parent=1 // pred_check
      _
    $region15: #{tpu_custom_call.1} parent=1 // pred_check_branch
      %33 = sbr.rel (0) target = $region17
    $region16: #{tpu_custom_call.1} parent=1 // pred_region
      _
    $region17: #{tpu_custom_call.1} parent=1 // pred_fallthru
      _
    // Predicated region
    $region18: #{tpu_custom_call.1} parent=1 // pred_check
      _
    $region19: #{tpu_custom_call.1} parent=1 // pred_check_branch
      %35 = sbr.rel (0) target = $region21
    $region20: #{tpu_custom_call.1} parent=1 // pred_region
      %s37 = ssub.s32 3072, 3072
      %38 = vsyncadd [#allocation7], %s37
      %s39 = sshll.u32 [#allocation6], 4
      %s40 = int_to_ptr.vmem [resolvable:$true] %s39
      %45 = dma.hbm_to_vmem [thread:$0]  %s4, 3072, %s40, [#allocation7], 192, 192, 12
    $region21: #{tpu_custom_call.1} parent=1 // pred_fallthru
      _
    // Predicated region
    $region22: #{tpu_custom_call.1} parent=1 // pred_check
      _
    $region23: #{tpu_custom_call.1} parent=1 // pred_check_branch
      %47 = sbr.rel (0) target = $region25
    $region24: #{tpu_custom_call.1} parent=1 // pred_region
      _
    $region25: #{tpu_custom_call.1} parent=1 // pred_fallthru
      _
    // Predicated region
    $region26: #{tpu_custom_call.1} parent=1 // pred_check
      _
    $region27: #{tpu_custom_call.1} parent=1 // pred_check_branch
      %49 = sbr.rel (0) target = $region29
    $region28: #{tpu_custom_call.1} parent=1 // pred_region
      %s51 = ssub.s32 1024, 1024
      %52 = vsyncadd [#allocation7], %s51
      %s53 = sshll.u32 [#allocation8], 4
      %s54 = int_to_ptr.vmem [resolvable:$true] %s53
      %59 = dma.hbm_to_vmem [thread:$0]  %s6, 1024, %s54, [#allocation7], 64, 64, 4
    $region29: #{tpu_custom_call.1} parent=1 // pred_fallthru
      _
    // Predicated region
    $region30: #{tpu_custom_call.1} parent=1 // pred_check
      _
    $region31: #{tpu_custom_call.1} parent=1 // pred_check_branch
      %61 = sbr.rel (0) target = $region33
    $region32: #{tpu_custom_call.1} parent=1 // pred_region
      _
    $region33: #{tpu_custom_call.1} parent=1 // pred_fallthru
      _
    // Predicated region
    $region34: #{tpu_custom_call.1} parent=1 // pred_check
      _
    $region35: #{tpu_custom_call.1} parent=1 // pred_check_branch
      %63 = sbr.rel (0) target = $region37
    $region36: #{tpu_custom_call.1} parent=1 // pred_region
      %64 = dma.done [#allocation4], 3072
    $region37: #{tpu_custom_call.1} parent=1 // pred_fallthru
      _
    // Predicated region
    $region38: #{tpu_custom_call.1} parent=1 // pred_check
      _
    $region39: #{tpu_custom_call.1} parent=1 // pred_check_branch
      %66 = sbr.rel (0) target = $region41
    $region40: #{tpu_custom_call.1} parent=1 // pred_region
      %67 = dma.done [#allocation7], 3072
    $region41: #{tpu_custom_call.1} parent=1 // pred_fallthru
      _
    // Predicated region
    $region42: #{tpu_custom_call.1} parent=1 // pred_check
      _
    $region43: #{tpu_custom_call.1} parent=1 // pred_check_branch
      %69 = sbr.rel (0) target = $region45
    $region44: #{tpu_custom_call.1} parent=1 // pred_region
      %70 = dma.done [#allocation7], 1024
    $region45: #{tpu_custom_call.1} parent=1 // pred_fallthru
      _
    %v72 = vld [vmem:[%s0] sm:$0xff]
    %v73 = vld [vmem:[%s0 + $0x8] sm:$0xff]
    %v74 = vld [vmem:[%s0 + $0x10] sm:$0xff]
    %v75 = vld [vmem:[%s0 + $0x18] sm:$0xff]
    %v76 = vld [vmem:[%s0 + $0x20] sm:$0xff]
    %v77 = vld [vmem:[%s0 + $0x28] sm:$0xff]
    %v78 = vld [vmem:[%s0 + $0x30] sm:$0xff]
    %v79 = vld [vmem:[%s0 + $0x38] sm:$0xff]
    %v80 = vlaneseq
    %v81 = vand.u32 %v80, 127
    %82 = vset.pattern.permute.xlu0 0
    %83 = vperm.xlu0 %82, %v72
    %v84 = vpop.permute.xlu0 %83
    %85 = vset.pattern.permute.xlu0 0
    %86 = vperm.xlu0 %85, %v73
    %v87 = vpop.permute.xlu0 %86
    %88 = vset.pattern.permute.xlu0 0
    %89 = vperm.xlu0 %88, %v74
    %v90 = vpop.permute.xlu0 %89
    %91 = vset.pattern.permute.xlu0 0
    %92 = vperm.xlu0 %91, %v75
    %v93 = vpop.permute.xlu0 %92
    %94 = vset.pattern.permute.xlu0 0
    %95 = vperm.xlu0 %94, %v76
    %v96 = vpop.permute.xlu0 %95
    %97 = vset.pattern.permute.xlu0 0
    %98 = vperm.xlu0 %97, %v77
    %v99 = vpop.permute.xlu0 %98
    %100 = vset.pattern.permute.xlu0 0
    %101 = vperm.xlu0 %100, %v78
    %v102 = vpop.permute.xlu0 %101
    %103 = vset.pattern.permute.xlu0 0
    %104 = vperm.xlu0 %103, %v79
    %v105 = vpop.permute.xlu0 %104
    %vm106 = vcmp.eq.s32.totalorder %v84, %v81
    %vm107 = vcmp.eq.s32.totalorder %v87, %v81
    %vm108 = vcmp.eq.s32.totalorder %v90, %v81
    %vm109 = vcmp.eq.s32.totalorder %v93, %v81
    %vm110 = vcmp.eq.s32.totalorder %v96, %v81
    %vm111 = vcmp.eq.s32.totalorder %v99, %v81
    %vm112 = vcmp.eq.s32.totalorder %v102, %v81
    %vm113 = vcmp.eq.s32.totalorder %v105, %v81
    %v114 = vsel %vm106, 1.0, 0.0
    %v115 = vsel %vm107, 1.0, 0.0
    %v116 = vsel %vm108, 1.0, 0.0
    %v117 = vsel %vm109, 1.0, 0.0
    %v118 = vsel %vm110, 1.0, 0.0
    %v119 = vsel %vm111, 1.0, 0.0
    %v120 = vsel %vm112, 1.0, 0.0
    %v121 = vsel %vm113, 1.0, 0.0
    %v122 = vpack.c.bf16 %v115, %v114
    %v123 = vpack.c.bf16 %v117, %v116
    %v124 = vpack.c.bf16 %v119, %v118
    %v125 = vpack.c.bf16 %v121, %v120
    %v126 = vld [vmem:[%s1] sm:$0xf]
    %v127 = vld [vmem:[%s1 + $0x4] sm:$0xf]
    %v128 = vld [vmem:[%s1 + $0x8] sm:$0xf]
    %v129 = vld [vmem:[%s1 + $0xc] sm:$0xf]
    %v130 = vld [vmem:[%s1 + $0x10] sm:$0xf]
    %v131 = vld [vmem:[%s1 + $0x14] sm:$0xf]
    %v132 = vld [vmem:[%s1 + $0x18] sm:$0xf]
    %v133 = vld [vmem:[%s1 + $0x1c] sm:$0xf]
    %v134 = vld [vmem:[%s1 + $0x20] sm:$0xf]
    %v135 = vld [vmem:[%s1 + $0x24] sm:$0xf]
    %v136 = vld [vmem:[%s1 + $0x28] sm:$0xf]
    %v137 = vld [vmem:[%s1 + $0x2c] sm:$0xf]
    %v138 = vld [vmem:[%s1 + $0x30] sm:$0xf]
    %v139 = vld [vmem:[%s1 + $0x34] sm:$0xf]
    %v140 = vld [vmem:[%s1 + $0x38] sm:$0xf]
    %v141 = vld [vmem:[%s1 + $0x3c] sm:$0xf]
    %v158 = vunpack.c.l.b16 %v126
    %v159 = vunpack.c.l.b16 %v127
    %v160 = vunpack.c.l.b16 %v128
    %v161 = vunpack.c.l.b16 %v129
    %v162 = vunpack.c.l.b16 %v130
    %v163 = vunpack.c.l.b16 %v131
    %v164 = vunpack.c.l.b16 %v132
    %v165 = vunpack.c.l.b16 %v133
    %v166 = vunpack.c.l.b16 %v134
    %v167 = vunpack.c.l.b16 %v135
    %v168 = vunpack.c.l.b16 %v136
    %v169 = vunpack.c.l.b16 %v137
    %v170 = vunpack.c.l.b16 %v138
    %v171 = vunpack.c.l.b16 %v139
    %v172 = vunpack.c.l.b16 %v140
    %v173 = vunpack.c.l.b16 %v141
    %v174 = vpack.c.b16 %v159, %v158
    %v175 = vpack.c.b16 %v161, %v160
    %v176 = vpack.c.b16 %v163, %v162
    %v177 = vpack.c.b16 %v165, %v164
    %v178 = vpack.c.b16 %v167, %v166
    %v179 = vpack.c.b16 %v169, %v168
    %v180 = vpack.c.b16 %v171, %v170
    %v181 = vpack.c.b16 %v173, %v172
    %190 = vmatprep.subr.bf16.mxu0 0
    %191 = vmatpush1.bf16.msra.mxu0 %v174
    %192 = vmatprep.subr.bf16.mxu0 0
    %193 = vmatpush1.bf16.msra.mxu0 %v175
    %194 = vmatprep.subr.bf16.mxu0 0
    %195 = vmatpush1.bf16.msra.mxu0 %v176
    %196 = vmatprep.subr.bf16.mxu0 0
    %197 = vmatpush1.bf16.msra.mxu0 %v177
    %198 = vmatprep.subr.bf16.mxu0 0
    %199 = vmatpush1.bf16.msra.mxu0 %v178
    %200 = vmatprep.subr.bf16.mxu0 0
    %201 = vmatpush1.bf16.msra.mxu0 %v179
    %202 = vmatprep.subr.bf16.mxu0 0
    %203 = vmatpush1.bf16.msra.mxu0 %v180
    %204 = vmatprep.subr.bf16.mxu0 0
    %205 = vmatpush1.bf16.msra.mxu0 %v181
    %206 = vmatprep.subr.bf16.mxu0 0
    %207 = vmatpush1.bf16.msra.mxu0 0
    %208 = vmatprep.subr.bf16.mxu0 0
    %209 = vmatpush1.bf16.msra.mxu0 0
    %210 = vmatprep.subr.bf16.mxu0 0
    %211 = vmatpush1.bf16.msra.mxu0 0
    %212 = vmatprep.subr.bf16.mxu0 0
    %213 = vmatpush1.bf16.msra.mxu0 0
    %214 = vmatprep.subr.bf16.mxu0 0
    %215 = vmatpush1.bf16.msra.mxu0 0
    %216 = vmatprep.subr.bf16.mxu0 0
    %217 = vmatpush1.bf16.msra.mxu0 0
    %218 = vmatprep.subr.bf16.mxu0 0
    %219 = vmatpush1.bf16.msra.mxu0 0
    %220 = vmatprep.subr.bf16.mxu0 0
    %221 = vmatpush1.bf16.msra.mxu0 0
    %222 = vmatprep.mubr.bf16.mxu0 0
    %223 = vmatmul.mubr.bf16.gmra.mrb[0].mxu0 %v122
    %v224 = vpop.f32.mrb[0].mxu0
    %v225 = vadd.f32 0.0, %v224
    %v226 = vpop.f32.mrb[0].mxu0
    %v227 = vpop.f32.mrb[0].mxu0
    %v228 = vadd.f32 0.0, %v227
    %v229 = vpop.f32.mrb[0].mxu0
    %230 = vmatprep.mubr.bf16.mxu0 0
    %231 = vmatmul.mubr.bf16.gmra.mrb[0].mxu0 %v123
    %v232 = vpop.f32.mrb[0].mxu0
    %v233 = vadd.f32 0.0, %v232
    %v234 = vpop.f32.mrb[0].mxu0
    %v235 = vpop.f32.mrb[0].mxu0
    %v236 = vadd.f32 0.0, %v235
    %v237 = vpop.f32.mrb[0].mxu0
    %238 = vmatprep.mubr.bf16.mxu0 0
    %239 = vmatmul.mubr.bf16.gmra.mrb[0].mxu0 %v124
    %v240 = vpop.f32.mrb[0].mxu0
    %v241 = vadd.f32 0.0, %v240
    %v242 = vpop.f32.mrb[0].mxu0
    %v243 = vpop.f32.mrb[0].mxu0
    %v244 = vadd.f32 0.0, %v243
    %v245 = vpop.f32.mrb[0].mxu0
    %246 = vmatprep.mubr.bf16.mxu0 0
    %247 = vmatmul.mubr.bf16.gmra.mrb[0].mxu0 %v125
    %v248 = vpop.f32.mrb[0].mxu0
    %v249 = vadd.f32 0.0, %v248
    %v250 = vpop.f32.mrb[0].mxu0
    %v251 = vpop.f32.mrb[0].mxu0
    %v252 = vadd.f32 0.0, %v251
    %v253 = vpop.f32.mrb[0].mxu0
    %254 = vdwg.mxu0
    %v255 = vpack.c.bf16 %v228, %v225
    %v256 = vpack.c.bf16 %v236, %v233
    %v257 = vpack.c.bf16 %v244, %v241
    %v258 = vpack.c.bf16 %v252, %v249
    %v259 = vld [vmem:[#allocation3] sm:$0xff]
    %v260 = vld [vmem:[#allocation3 + $0x8] sm:$0xf]
    %v261 = vld [vmem:[#allocation3 + $0xc] sm:$0xff]
    %v262 = vld [vmem:[#allocation3 + $0x14] sm:$0xf]
    %v263 = vld [vmem:[#allocation3 + $0x18] sm:$0xff]
    %v264 = vld [vmem:[#allocation3 + $0x20] sm:$0xf]
    %v265 = vld [vmem:[#allocation3 + $0x24] sm:$0xff]
    %v266 = vld [vmem:[#allocation3 + $0x2c] sm:$0xf]
    %v267 = vld [vmem:[#allocation3 + $0x30] sm:$0xff]
    %v268 = vld [vmem:[#allocation3 + $0x38] sm:$0xf]
    %v269 = vld [vmem:[#allocation3 + $0x3c] sm:$0xff]
    %v270 = vld [vmem:[#allocation3 + $0x44] sm:$0xf]
    %v271 = vld [vmem:[#allocation3 + $0x48] sm:$0xff]
    %v272 = vld [vmem:[#allocation3 + $0x50] sm:$0xf]
    %v273 = vld [vmem:[#allocation3 + $0x54] sm:$0xff]
    %v274 = vld [vmem:[#allocation3 + $0x5c] sm:$0xf]
    %v275 = vld [vmem:[#allocation3 + $0x60] sm:$0xff]
    %v276 = vld [vmem:[#allocation3 + $0x68] sm:$0xf]
    %v277 = vld [vmem:[#allocation3 + $0x6c] sm:$0xff]
    %v278 = vld [vmem:[#allocation3 + $0x74] sm:$0xf]
    %v279 = vld [vmem:[#allocation3 + $0x78] sm:$0xff]
    %v280 = vld [vmem:[#allocation3 + $0x80] sm:$0xf]
    %v281 = vld [vmem:[#allocation3 + $0x84] sm:$0xff]
    %v282 = vld [vmem:[#allocation3 + $0x8c] sm:$0xf]
    %v283 = vld [vmem:[#allocation3 + $0x90] sm:$0xff]
    %v284 = vld [vmem:[#allocation3 + $0x98] sm:$0xf]
    %v285 = vld [vmem:[#allocation3 + $0x9c] sm:$0xff]
    %v286 = vld [vmem:[#allocation3 + $0xa4] sm:$0xf]
    %v287 = vld [vmem:[#allocation3 + $0xa8] sm:$0xff]
    %v288 = vld [vmem:[#allocation3 + $0xb0] sm:$0xf]
    %v289 = vld [vmem:[#allocation3 + $0xb4] sm:$0xff]
    %v290 = vld [vmem:[#allocation3 + $0xbc] sm:$0xf]
    %v291 = vld [vmem:[%s3] sm:$0x7]
    %v293 = vlaneseq
    %v294 = vshrl.u32 %v293, 7
    %v295 = vsub.s32 0, %v294
    %v296 = vrot.slane %v291, %v295
    %v297 = vlaneseq
    %v298 = vshrl.u32 %v297, 7
    %v299 = vsub.s32 1, %v298
    %v300 = vrot.slane %v291, %v299
    %v301 = vlaneseq
    %v302 = vshrl.u32 %v301, 7
    %v303 = vsub.s32 2, %v302
    %v304 = vrot.slane %v291, %v303
    %v340 = vunpack.c.l.b16 %v259
    %v341 = vunpack.c.h.b16 %v259
    %v342 = vunpack.c.l.b16 %v260
    %v343 = vunpack.c.l.b16 %v261
    %v344 = vunpack.c.h.b16 %v261
    %v345 = vunpack.c.l.b16 %v262
    %v346 = vunpack.c.l.b16 %v263
    %v347 = vunpack.c.h.b16 %v263
    %v348 = vunpack.c.l.b16 %v264
    %v349 = vunpack.c.l.b16 %v265
    %v350 = vunpack.c.h.b16 %v265
    %v351 = vunpack.c.l.b16 %v266
    %v352 = vunpack.c.l.b16 %v267
    %v353 = vunpack.c.h.b16 %v267
    %v354 = vunpack.c.l.b16 %v268
    %v355 = vunpack.c.l.b16 %v269
    %v356 = vunpack.c.h.b16 %v269
    %v357 = vunpack.c.l.b16 %v270
    %v358 = vunpack.c.l.b16 %v271
    %v359 = vunpack.c.h.b16 %v271
    %v360 = vunpack.c.l.b16 %v272
    %v361 = vunpack.c.l.b16 %v273
    %v362 = vunpack.c.h.b16 %v273
    %v363 = vunpack.c.l.b16 %v274
    %v364 = vunpack.c.l.b16 %v275
    %v365 = vunpack.c.h.b16 %v275
    %v366 = vunpack.c.l.b16 %v276
    %v367 = vunpack.c.l.b16 %v277
    %v368 = vunpack.c.h.b16 %v277
    %v369 = vunpack.c.l.b16 %v278
    %v370 = vunpack.c.l.b16 %v279
    %v371 = vunpack.c.h.b16 %v279
    %v372 = vunpack.c.l.b16 %v280
    %v373 = vunpack.c.l.b16 %v281
    %v374 = vunpack.c.h.b16 %v281
    %v375 = vunpack.c.l.b16 %v282
    %v376 = vunpack.c.l.b16 %v283
    %v377 = vunpack.c.h.b16 %v283
    %v378 = vunpack.c.l.b16 %v284
    %v379 = vunpack.c.l.b16 %v285
    %v380 = vunpack.c.h.b16 %v285
    %v381 = vunpack.c.l.b16 %v286
    %v382 = vunpack.c.l.b16 %v287
    %v383 = vunpack.c.h.b16 %v287
    %v384 = vunpack.c.l.b16 %v288
    %v385 = vunpack.c.l.b16 %v289
    %v386 = vunpack.c.h.b16 %v289
    %v387 = vunpack.c.l.b16 %v290
    %v388 = vpack.c.b16 %v343, %v340
    %v389 = vpack.c.b16 %v344, %v341
    %v390 = vpack.c.b16 %v345, %v342
    %v391 = vpack.c.b16 %v349, %v346
    %v392 = vpack.c.b16 %v350, %v347
    %v393 = vpack.c.b16 %v351, %v348
    %v394 = vpack.c.b16 %v355, %v352
    %v395 = vpack.c.b16 %v356, %v353
    %v396 = vpack.c.b16 %v357, %v354
    %v397 = vpack.c.b16 %v361, %v358
    %v398 = vpack.c.b16 %v362, %v359
    %v399 = vpack.c.b16 %v363, %v360
    %v400 = vpack.c.b16 %v367, %v364
    %v401 = vpack.c.b16 %v368, %v365
    %v402 = vpack.c.b16 %v369, %v366
    %v403 = vpack.c.b16 %v373, %v370
    %v404 = vpack.c.b16 %v374, %v371
    %v405 = vpack.c.b16 %v375, %v372
    %v406 = vpack.c.b16 %v379, %v376
    %v407 = vpack.c.b16 %v380, %v377
    %v408 = vpack.c.b16 %v381, %v378
    %v409 = vpack.c.b16 %v385, %v382
    %v410 = vpack.c.b16 %v386, %v383
    %v411 = vpack.c.b16 %v387, %v384
    %436 = vmatprep.subr.bf16.mxu0 %v389
    %437 = vmatpush1.bf16.msra.mxu0 %v388
    %438 = vmatprep.subr.bf16.mxu0 %v392
    %439 = vmatpush1.bf16.msra.mxu0 %v391
    %440 = vmatprep.subr.bf16.mxu0 %v395
    %441 = vmatpush1.bf16.msra.mxu0 %v394
    %442 = vmatprep.subr.bf16.mxu0 %v398
    %443 = vmatpush1.bf16.msra.mxu0 %v397
    %444 = vmatprep.subr.bf16.mxu0 %v401
    %445 = vmatpush1.bf16.msra.mxu0 %v400
    %446 = vmatprep.subr.bf16.mxu0 %v404
    %447 = vmatpush1.bf16.msra.mxu0 %v403
    %448 = vmatprep.subr.bf16.mxu0 %v407
    %449 = vmatpush1.bf16.msra.mxu0 %v406
    %450 = vmatprep.subr.bf16.mxu0 %v410
    %451 = vmatpush1.bf16.msra.mxu0 %v409
    %452 = vmatprep.subr.bf16.mxu0 0
    %453 = vmatpush1.bf16.msra.mxu0 0
    %454 = vmatprep.subr.bf16.mxu0 0
    %455 = vmatpush1.bf16.msra.mxu0 0
    %456 = vmatprep.subr.bf16.mxu0 0
    %457 = vmatpush1.bf16.msra.mxu0 0
    %458 = vmatprep.subr.bf16.mxu0 0
    %459 = vmatpush1.bf16.msra.mxu0 0
    %460 = vmatprep.subr.bf16.mxu0 0
    %461 = vmatpush1.bf16.msra.mxu0 0
    %462 = vmatprep.subr.bf16.mxu0 0
    %463 = vmatpush1.bf16.msra.mxu0 0
    %464 = vmatprep.subr.bf16.mxu0 0
    %465 = vmatpush1.bf16.msra.mxu0 0
    %466 = vmatprep.subr.bf16.mxu0 0
    %467 = vmatpush1.bf16.msra.mxu0 0
    %468 = vmatprep.mubr.bf16.mxu0 0
    %469 = vmatmul.mubr.bf16.gmra.mrb[0].mxu0 %v255
    %v470 = vpop.f32.mrb[0].mxu0
    %v471 = vadd.f32 %v296, %v470
    %v472 = vpop.f32.mrb[0].mxu0
    %v473 = vadd.f32 %v300, %v472
    %v474 = vpop.f32.mrb[0].mxu0
    %v475 = vadd.f32 %v296, %v474
    %v476 = vpop.f32.mrb[0].mxu0
    %v477 = vadd.f32 %v300, %v476
    %478 = vmatprep.mubr.bf16.mxu0 0
    %479 = vmatmul.mubr.bf16.gmra.mrb[0].mxu0 %v256
    %v480 = vpop.f32.mrb[0].mxu0
    %v481 = vadd.f32 %v296, %v480
    %v482 = vpop.f32.mrb[0].mxu0
    %v483 = vadd.f32 %v300, %v482
    %v484 = vpop.f32.mrb[0].mxu0
    %v485 = vadd.f32 %v296, %v484
    %v486 = vpop.f32.mrb[0].mxu0
    %v487 = vadd.f32 %v300, %v486
    %488 = vmatprep.mubr.bf16.mxu0 0
    %489 = vmatmul.mubr.bf16.gmra.mrb[0].mxu0 %v257
    %v490 = vpop.f32.mrb[0].mxu0
    %v491 = vadd.f32 %v296, %v490
    %v492 = vpop.f32.mrb[0].mxu0
    %v493 = vadd.f32 %v300, %v492
    %v494 = vpop.f32.mrb[0].mxu0
    %v495 = vadd.f32 %v296, %v494
    %v496 = vpop.f32.mrb[0].mxu0
    %v497 = vadd.f32 %v300, %v496
    %498 = vmatprep.mubr.bf16.mxu0 0
    %499 = vmatmul.mubr.bf16.gmra.mrb[0].mxu0 %v258
    %v500 = vpop.f32.mrb[0].mxu0
    %v501 = vadd.f32 %v296, %v500
    %v502 = vpop.f32.mrb[0].mxu0
    %v503 = vadd.f32 %v300, %v502
    %v504 = vpop.f32.mrb[0].mxu0
    %v505 = vadd.f32 %v296, %v504
    %v506 = vpop.f32.mrb[0].mxu0
    %v507 = vadd.f32 %v300, %v506
    %508 = vdwg.mxu0
    %509 = vmatprep.subr.bf16.mxu0 0
    %510 = vmatpush1.bf16.msra.mxu0 %v390
    %511 = vmatprep.subr.bf16.mxu0 0
    %512 = vmatpush1.bf16.msra.mxu0 %v393
    %513 = vmatprep.subr.bf16.mxu0 0
    %514 = vmatpush1.bf16.msra.mxu0 %v396
    %515 = vmatprep.subr.bf16.mxu0 0
    %516 = vmatpush1.bf16.msra.mxu0 %v399
    %517 = vmatprep.subr.bf16.mxu0 0
    %518 = vmatpush1.bf16.msra.mxu0 %v402
    %519 = vmatprep.subr.bf16.mxu0 0
    %520 = vmatpush1.bf16.msra.mxu0 %v405
    %521 = vmatprep.subr.bf16.mxu0 0
    %522 = vmatpush1.bf16.msra.mxu0 %v408
    %523 = vmatprep.subr.bf16.mxu0 0
    %524 = vmatpush1.bf16.msra.mxu0 %v411
    %525 = vmatprep.subr.bf16.mxu0 0
    %526 = vmatpush1.bf16.msra.mxu0 0
    %527 = vmatprep.subr.bf16.mxu0 0
    %528 = vmatpush1.bf16.msra.mxu0 0
    %529 = vmatprep.subr.bf16.mxu0 0
    %530 = vmatpush1.bf16.msra.mxu0 0
    %531 = vmatprep.subr.bf16.mxu0 0
    %532 = vmatpush1.bf16.msra.mxu0 0
    %533 = vmatprep.subr.bf16.mxu0 0
    %534 = vmatpush1.bf16.msra.mxu0 0
    %535 = vmatprep.subr.bf16.mxu0 0
    %536 = vmatpush1.bf16.msra.mxu0 0
    %537 = vmatprep.subr.bf16.mxu0 0
    %538 = vmatpush1.bf16.msra.mxu0 0
    %539 = vmatprep.subr.bf16.mxu0 0
    %540 = vmatpush1.bf16.msra.mxu0 0
    %541 = vmatprep.mubr.bf16.mxu0 0
    %542 = vmatmul.mubr.bf16.gmra.mrb[0].mxu0 %v255
    %v543 = vpop.f32.mrb[0].mxu0
    %v544 = vadd.f32 %v304, %v543
    %v545 = vpop.f32.mrb[0].mxu0
    %v546 = vpop.f32.mrb[0].mxu0
    %v547 = vadd.f32 %v304, %v546
    %v548 = vpop.f32.mrb[0].mxu0
    %549 = vmatprep.mubr.bf16.mxu0 0
    %550 = vmatmul.mubr.bf16.gmra.mrb[0].mxu0 %v256
    %v551 = vpop.f32.mrb[0].mxu0
    %v552 = vadd.f32 %v304, %v551
    %v553 = vpop.f32.mrb[0].mxu0
    %v554 = vpop.f32.mrb[0].mxu0
    %v555 = vadd.f32 %v304, %v554
    %v556 = vpop.f32.mrb[0].mxu0
    %557 = vmatprep.mubr.bf16.mxu0 0
    %558 = vmatmul.mubr.bf16.gmra.mrb[0].mxu0 %v257
    %v559 = vpop.f32.mrb[0].mxu0
    %v560 = vadd.f32 %v304, %v559
    %v561 = vpop.f32.mrb[0].mxu0
    %v562 = vpop.f32.mrb[0].mxu0
    %v563 = vadd.f32 %v304, %v562
    %v564 = vpop.f32.mrb[0].mxu0
    %565 = vmatprep.mubr.bf16.mxu0 0
    %566 = vmatmul.mubr.bf16.gmra.mrb[0].mxu0 %v258
    %v567 = vpop.f32.mrb[0].mxu0
    %v568 = vadd.f32 %v304, %v567
    %v569 = vpop.f32.mrb[0].mxu0
    %v570 = vpop.f32.mrb[0].mxu0
    %v571 = vadd.f32 %v304, %v570
    %v572 = vpop.f32.mrb[0].mxu0
    %573 = vdwg.mxu0
    %574 = vst [vmem:[#allocation2] sm:$0xff] %v471
    %575 = vst [vmem:[#allocation2 + $0x8] sm:$0xff] %v473
    %576 = vst [vmem:[#allocation2 + $0x10] sm:$0xff] %v544
    %577 = vst [vmem:[#allocation2 + $0x18] sm:$0xff] %v475
    %578 = vst [vmem:[#allocation2 + $0x20] sm:$0xff] %v477
    %579 = vst [vmem:[#allocation2 + $0x28] sm:$0xff] %v547
    %580 = vst [vmem:[#allocation2 + $0x30] sm:$0xff] %v481
    %581 = vst [vmem:[#allocation2 + $0x38] sm:$0xff] %v483
    %582 = vst [vmem:[#allocation2 + $0x40] sm:$0xff] %v552
    %583 = vst [vmem:[#allocation2 + $0x48] sm:$0xff] %v485
    %584 = vst [vmem:[#allocation2 + $0x50] sm:$0xff] %v487
    %585 = vst [vmem:[#allocation2 + $0x58] sm:$0xff] %v555
    %586 = vst [vmem:[#allocation2 + $0x60] sm:$0xff] %v491
    %587 = vst [vmem:[#allocation2 + $0x68] sm:$0xff] %v493
    %588 = vst [vmem:[#allocation2 + $0x70] sm:$0xff] %v560
    %589 = vst [vmem:[#allocation2 + $0x78] sm:$0xff] %v495
    %590 = vst [vmem:[#allocation2 + $0x80] sm:$0xff] %v497
    %591 = vst [vmem:[#allocation2 + $0x88] sm:$0xff] %v563
    %592 = vst [vmem:[#allocation2 + $0x90] sm:$0xff] %v501
    %593 = vst [vmem:[#allocation2 + $0x98] sm:$0xff] %v503
    %594 = vst [vmem:[#allocation2 + $0xa0] sm:$0xff] %v568
    %595 = vst [vmem:[#allocation2 + $0xa8] sm:$0xff] %v505
    %596 = vst [vmem:[#allocation2 + $0xb0] sm:$0xff] %v507
    %597 = vst [vmem:[#allocation2 + $0xb8] sm:$0xff] %v571
    %v598 = vld [vmem:[#allocation6] sm:$0xff]
    %v599 = vld [vmem:[#allocation6 + $0x8] sm:$0xf]
    %v600 = vld [vmem:[#allocation6 + $0xc] sm:$0xff]
    %v601 = vld [vmem:[#allocation6 + $0x14] sm:$0xf]
    %v602 = vld [vmem:[#allocation6 + $0x18] sm:$0xff]
    %v603 = vld [vmem:[#allocation6 + $0x20] sm:$0xf]
    %v604 = vld [vmem:[#allocation6 + $0x24] sm:$0xff]
    %v605 = vld [vmem:[#allocation6 + $0x2c] sm:$0xf]
    %v606 = vld [vmem:[#allocation6 + $0x30] sm:$0xff]
    %v607 = vld [vmem:[#allocation6 + $0x38] sm:$0xf]
    %v608 = vld [vmem:[#allocation6 + $0x3c] sm:$0xff]
    %v609 = vld [vmem:[#allocation6 + $0x44] sm:$0xf]
    %v610 = vld [vmem:[#allocation6 + $0x48] sm:$0xff]
    %v611 = vld [vmem:[#allocation6 + $0x50] sm:$0xf]
    %v612 = vld [vmem:[#allocation6 + $0x54] sm:$0xff]
    %v613 = vld [vmem:[#allocation6 + $0x5c] sm:$0xf]
    %v614 = vld [vmem:[#allocation6 + $0x60] sm:$0xff]
    %v615 = vld [vmem:[#allocation6 + $0x68] sm:$0xf]
    %v616 = vld [vmem:[#allocation6 + $0x6c] sm:$0xff]
    %v617 = vld [vmem:[#allocation6 + $0x74] sm:$0xf]
    %v618 = vld [vmem:[#allocation6 + $0x78] sm:$0xff]
    %v619 = vld [vmem:[#allocation6 + $0x80] sm:$0xf]
    %v620 = vld [vmem:[#allocation6 + $0x84] sm:$0xff]
    %v621 = vld [vmem:[#allocation6 + $0x8c] sm:$0xf]
    %v622 = vld [vmem:[#allocation6 + $0x90] sm:$0xff]
    %v623 = vld [vmem:[#allocation6 + $0x98] sm:$0xf]
    %v624 = vld [vmem:[#allocation6 + $0x9c] sm:$0xff]
    %v625 = vld [vmem:[#allocation6 + $0xa4] sm:$0xf]
    %v626 = vld [vmem:[#allocation6 + $0xa8] sm:$0xff]
    %v627 = vld [vmem:[#allocation6 + $0xb0] sm:$0xf]
    %v628 = vld [vmem:[#allocation6 + $0xb4] sm:$0xff]
    %v629 = vld [vmem:[#allocation6 + $0xbc] sm:$0xf]
    %v630 = vld [vmem:[%s5] sm:$0x1]
    %v632 = vlaneseq
    %v633 = vshrl.u32 %v632, 7
    %v634 = vsub.s32 0, %v633
    %v635 = vrot.slane %v630, %v634
    %s637 = smul.u32 0, 3
    %s638 = smul.addr %s637, 8
    %s639 = scalar_lea.vmem [#allocation2], %s638
    %v640 = vld [vmem:[%s639] sm:$0xff]
    %v641 = vld [vmem:[%s639 + $0x8] sm:$0xff]
    %v642 = vld [vmem:[%s639 + $0x10] sm:$0xff]
    %v675 = vunpack.c.l.b16 %v598
    %v676 = vunpack.c.h.b16 %v598
    %v677 = vunpack.c.l.b16 %v599
    %v678 = vunpack.c.l.b16 %v600
    %v679 = vunpack.c.h.b16 %v600
    %v680 = vunpack.c.l.b16 %v601
    %v681 = vunpack.c.l.b16 %v602
    %v682 = vunpack.c.h.b16 %v602
    %v683 = vunpack.c.l.b16 %v603
    %v684 = vunpack.c.l.b16 %v604
    %v685 = vunpack.c.h.b16 %v604
    %v686 = vunpack.c.l.b16 %v605
    %v687 = vunpack.c.l.b16 %v606
    %v688 = vunpack.c.h.b16 %v606
    %v689 = vunpack.c.l.b16 %v607
    %v690 = vunpack.c.l.b16 %v608
    %v691 = vunpack.c.h.b16 %v608
    %v692 = vunpack.c.l.b16 %v609
    %v693 = vunpack.c.l.b16 %v610
    %v694 = vunpack.c.h.b16 %v610
    %v695 = vunpack.c.l.b16 %v611
    %v696 = vunpack.c.l.b16 %v612
    %v697 = vunpack.c.h.b16 %v612
    %v698 = vunpack.c.l.b16 %v613
    %v699 = vunpack.c.l.b16 %v614
    %v700 = vunpack.c.h.b16 %v614
    %v701 = vunpack.c.l.b16 %v615
    %v702 = vunpack.c.l.b16 %v616
    %v703 = vunpack.c.h.b16 %v616
    %v704 = vunpack.c.l.b16 %v617
    %v705 = vunpack.c.l.b16 %v618
    %v706 = vunpack.c.h.b16 %v618
    %v707 = vunpack.c.l.b16 %v619
    %v708 = vunpack.c.l.b16 %v620
    %v709 = vunpack.c.h.b16 %v620
    %v710 = vunpack.c.l.b16 %v621
    %v711 = vunpack.c.l.b16 %v622
    %v712 = vunpack.c.h.b16 %v622
    %v713 = vunpack.c.l.b16 %v623
    %v714 = vunpack.c.l.b16 %v624
    %v715 = vunpack.c.h.b16 %v624
    %v716 = vunpack.c.l.b16 %v625
    %v717 = vunpack.c.l.b16 %v626
    %v718 = vunpack.c.h.b16 %v626
    %v719 = vunpack.c.l.b16 %v627
    %v720 = vunpack.c.l.b16 %v628
    %v721 = vunpack.c.h.b16 %v628
    %v722 = vunpack.c.l.b16 %v629
    %v723 = vpack.c.b16 %v678, %v675
    %v724 = vpack.c.b16 %v679, %v676
    %v725 = vpack.c.b16 %v680, %v677
    %v726 = vpack.c.b16 %v684, %v681
    %v727 = vpack.c.b16 %v685, %v682
    %v728 = vpack.c.b16 %v686, %v683
    %v729 = vpack.c.b16 %v690, %v687
    %v730 = vpack.c.b16 %v691, %v688
    %v731 = vpack.c.b16 %v692, %v689
    %v732 = vpack.c.b16 %v696, %v693
    %v733 = vpack.c.b16 %v697, %v694
    %v734 = vpack.c.b16 %v698, %v695
    %v735 = vpack.c.b16 %v702, %v699
    %v736 = vpack.c.b16 %v703, %v700
    %v737 = vpack.c.b16 %v704, %v701
    %v738 = vpack.c.b16 %v708, %v705
    %v739 = vpack.c.b16 %v709, %v706
    %v740 = vpack.c.b16 %v710, %v707
    %v741 = vpack.c.b16 %v714, %v711
    %v742 = vpack.c.b16 %v715, %v712
    %v743 = vpack.c.b16 %v716, %v713
    %v744 = vpack.c.b16 %v720, %v717
    %v745 = vpack.c.b16 %v721, %v718
    %v746 = vpack.c.b16 %v722, %v719
    %771 = vmatprep.subr.bf16.mxu0 %v724
    %772 = vmatpush1.bf16.msra.mxu0 %v723
    %773 = vmatprep.subr.bf16.mxu0 %v727
    %774 = vmatpush1.bf16.msra.mxu0 %v726
    %775 = vmatprep.subr.bf16.mxu0 %v730
    %776 = vmatpush1.bf16.msra.mxu0 %v729
    %777 = vmatprep.subr.bf16.mxu0 %v733
    %778 = vmatpush1.bf16.msra.mxu0 %v732
    %779 = vmatprep.subr.bf16.mxu0 %v736
    %780 = vmatpush1.bf16.msra.mxu0 %v735
    %781 = vmatprep.subr.bf16.mxu0 %v739
    %782 = vmatpush1.bf16.msra.mxu0 %v738
    %783 = vmatprep.subr.bf16.mxu0 %v742
    %784 = vmatpush1.bf16.msra.mxu0 %v741
    %785 = vmatprep.subr.bf16.mxu0 %v745
    %786 = vmatpush1.bf16.msra.mxu0 %v744
    %787 = vmatprep.subr.bf16.mxu0 0
    %788 = vmatpush1.bf16.msra.mxu0 0
    %789 = vmatprep.subr.bf16.mxu0 0
    %790 = vmatpush1.bf16.msra.mxu0 0
    %791 = vmatprep.subr.bf16.mxu0 0
    %792 = vmatpush1.bf16.msra.mxu0 0
    %793 = vmatprep.subr.bf16.mxu0 0
    %794 = vmatpush1.bf16.msra.mxu0 0
    %795 = vmatprep.subr.bf16.mxu0 0
    %796 = vmatpush1.bf16.msra.mxu0 0
    %797 = vmatprep.subr.bf16.mxu0 0
    %798 = vmatpush1.bf16.msra.mxu0 0
    %799 = vmatprep.subr.bf16.mxu0 0
    %800 = vmatpush1.bf16.msra.mxu0 0
    %801 = vmatprep.subr.bf16.mxu0 0
    %802 = vmatpush1.bf16.msra.mxu0 0
    %803 = vmatprep.mubr.bf16.mxu0 0
    %804 = vmatmul.mubr.bf16.gmra.mrb[0].mxu0 0
    %v805 = vpop.f32.mrb[0].mxu0
    %v806 = vadd.f32 0.0, %v805
    %v807 = vpop.f32.mrb[0].mxu0
    %v808 = vadd.f32 0.0, %v807
    %v809 = vpop.f32.mrb[0].mxu0
    %v810 = vpop.f32.mrb[0].mxu0
    %811 = vdwg.mxu0
    %812 = vmatprep.subr.bf16.mxu0 0
    %813 = vmatpush1.bf16.msra.mxu0 %v725
    %814 = vmatprep.subr.bf16.mxu0 0
    %815 = vmatpush1.bf16.msra.mxu0 %v728
    %816 = vmatprep.subr.bf16.mxu0 0
    %817 = vmatpush1.bf16.msra.mxu0 %v731
    %818 = vmatprep.subr.bf16.mxu0 0
    %819 = vmatpush1.bf16.msra.mxu0 %v734
    %820 = vmatprep.subr.bf16.mxu0 0
    %821 = vmatpush1.bf16.msra.mxu0 %v737
    %822 = vmatprep.subr.bf16.mxu0 0
    %823 = vmatpush1.bf16.msra.mxu0 %v740
    %824 = vmatprep.subr.bf16.mxu0 0
    %825 = vmatpush1.bf16.msra.mxu0 %v743
    %826 = vmatprep.subr.bf16.mxu0 0
    %827 = vmatpush1.bf16.msra.mxu0 %v746
    %828 = vmatprep.subr.bf16.mxu0 0
    %829 = vmatpush1.bf16.msra.mxu0 0
    %830 = vmatprep.subr.bf16.mxu0 0
    %831 = vmatpush1.bf16.msra.mxu0 0
    %832 = vmatprep.subr.bf16.mxu0 0
    %833 = vmatpush1.bf16.msra.mxu0 0
    %834 = vmatprep.subr.bf16.mxu0 0
    %835 = vmatpush1.bf16.msra.mxu0 0
    %836 = vmatprep.subr.bf16.mxu0 0
    %837 = vmatpush1.bf16.msra.mxu0 0
    %838 = vmatprep.subr.bf16.mxu0 0
    %839 = vmatpush1.bf16.msra.mxu0 0
    %840 = vmatprep.subr.bf16.mxu0 0
    %841 = vmatpush1.bf16.msra.mxu0 0
    %842 = vmatprep.subr.bf16.mxu0 0
    %843 = vmatpush1.bf16.msra.mxu0 0
    %844 = vmatprep.mubr.bf16.mxu0 0
    %845 = vmatmul.mubr.bf16.gmra.mrb[0].mxu0 0
    %v846 = vpop.f32.mrb[0].mxu0
    %v847 = vadd.f32 0.0, %v846
    %v848 = vpop.f32.mrb[0].mxu0
    %v849 = vpop.f32.mrb[0].mxu0
    %v850 = vpop.f32.mrb[0].mxu0
    %851 = vdwg.mxu0
    %v852 = vadd.f32 %v640, %v806
    %v853 = vxor.u32 %v852, 2147483648
    %v854 = vmul.f32 %v853, 1.442695
    %v855 = vpow.pop %v854
    %v856 = vadd.f32 %v855, 1.0
    %v857 = vrcp.pop %v856
    %v858 = vmul.f32 1.0, %v857
    %v859 = vadd.f32 %v641, %v808
    %v860 = vxor.u32 %v859, 2147483648
    %v861 = vmul.f32 %v860, 1.442695
    %v862 = vpow.pop %v861
    %v863 = vadd.f32 %v862, 1.0
    %v864 = vrcp.pop %v863
    %v865 = vmul.f32 1.0, %v864
    %v866 = vadd.f32 %v847, %v635
    %v867 = vmul.f32 %v858, %v866
    %v868 = vadd.f32 %v642, %v867
    %v869 = vtanh.pop %v868
    %v870 = vsub.f32 1.0, %v865
    %v871 = vmul.f32 %v870, %v869
    %v872 = vmul.f32 %v865, 0.0
    %v873 = vadd.f32 %v871, %v872
    %s874 = smul.u32 1, 3
    %s875 = smul.addr %s874, 8
    %s876 = scalar_lea.vmem [#allocation2], %s875
    %v877 = vld [vmem:[%s876] sm:$0xff]
    %v878 = vld [vmem:[%s876 + $0x8] sm:$0xff]
    %v879 = vld [vmem:[%s876 + $0x10] sm:$0xff]
    %v880 = vpack.c.bf16 %v873, %v873
    %881 = vmatprep.subr.bf16.mxu0 %v724
    %882 = vmatpush1.bf16.msra.mxu0 %v723
    %883 = vmatprep.subr.bf16.mxu0 %v727
    %884 = vmatpush1.bf16.msra.mxu0 %v726
    %885 = vmatprep.subr.bf16.mxu0 %v730
    %886 = vmatpush1.bf16.msra.mxu0 %v729
    %887 = vmatprep.subr.bf16.mxu0 %v733
    %888 = vmatpush1.bf16.msra.mxu0 %v732
    %889 = vmatprep.subr.bf16.mxu0 %v736
    %890 = vmatpush1.bf16.msra.mxu0 %v735
    %891 = vmatprep.subr.bf16.mxu0 %v739
    %892 = vmatpush1.bf16.msra.mxu0 %v738
    %893 = vmatprep.subr.bf16.mxu0 %v742
    %894 = vmatpush1.bf16.msra.mxu0 %v741
    %895 = vmatprep.subr.bf16.mxu0 %v745
    %896 = vmatpush1.bf16.msra.mxu0 %v744
    %897 = vmatprep.subr.bf16.mxu0 0
    %898 = vmatpush1.bf16.msra.mxu0 0
    %899 = vmatprep.subr.bf16.mxu0 0
    %900 = vmatpush1.bf16.msra.mxu0 0
    %901 = vmatprep.subr.bf16.mxu0 0
    %902 = vmatpush1.bf16.msra.mxu0 0
    %903 = vmatprep.subr.bf16.mxu0 0
    %904 = vmatpush1.bf16.msra.mxu0 0
    %905 = vmatprep.subr.bf16.mxu0 0
    %906 = vmatpush1.bf16.msra.mxu0 0
    %907 = vmatprep.subr.bf16.mxu0 0
    %908 = vmatpush1.bf16.msra.mxu0 0
    %909 = vmatprep.subr.bf16.mxu0 0
    %910 = vmatpush1.bf16.msra.mxu0 0
    %911 = vmatprep.subr.bf16.mxu0 0
    %912 = vmatpush1.bf16.msra.mxu0 0
    %913 = vmatprep.mubr.bf16.mxu0 0
    %914 = vmatmul.mubr.bf16.gmra.mrb[0].mxu0 %v880
    %v915 = vpop.f32.mrb[0].mxu0
    %v916 = vadd.f32 0.0, %v915
    %v917 = vpop.f32.mrb[0].mxu0
    %v918 = vadd.f32 0.0, %v917
    %v919 = vpop.f32.mrb[0].mxu0
    %v920 = vpop.f32.mrb[0].mxu0
    %921 = vdwg.mxu0
    %922 = vmatprep.subr.bf16.mxu0 0
    %923 = vmatpush1.bf16.msra.mxu0 %v725
    %924 = vmatprep.subr.bf16.mxu0 0
    %925 = vmatpush1.bf16.msra.mxu0 %v728
    %926 = vmatprep.subr.bf16.mxu0 0
    %927 = vmatpush1.bf16.msra.mxu0 %v731
    %928 = vmatprep.subr.bf16.mxu0 0
    %929 = vmatpush1.bf16.msra.mxu0 %v734
    %930 = vmatprep.subr.bf16.mxu0 0
    %931 = vmatpush1.bf16.msra.mxu0 %v737
    %932 = vmatprep.subr.bf16.mxu0 0
    %933 = vmatpush1.bf16.msra.mxu0 %v740
    %934 = vmatprep.subr.bf16.mxu0 0
    %935 = vmatpush1.bf16.msra.mxu0 %v743
    %936 = vmatprep.subr.bf16.mxu0 0
    %937 = vmatpush1.bf16.msra.mxu0 %v746
    %938 = vmatprep.subr.bf16.mxu0 0
    %939 = vmatpush1.bf16.msra.mxu0 0
    %940 = vmatprep.subr.bf16.mxu0 0
    %941 = vmatpush1.bf16.msra.mxu0 0
    %942 = vmatprep.subr.bf16.mxu0 0
    %943 = vmatpush1.bf16.msra.mxu0 0
    %944 = vmatprep.subr.bf16.mxu0 0
    %945 = vmatpush1.bf16.msra.mxu0 0
    %946 = vmatprep.subr.bf16.mxu0 0
    %947 = vmatpush1.bf16.msra.mxu0 0
    %948 = vmatprep.subr.bf16.mxu0 0
    %949 = vmatpush1.bf16.msra.mxu0 0
    %950 = vmatprep.subr.bf16.mxu0 0
    %951 = vmatpush1.bf16.msra.mxu0 0
    %952 = vmatprep.subr.bf16.mxu0 0
    %953 = vmatpush1.bf16.msra.mxu0 0
    %954 = vmatprep.mubr.bf16.mxu0 0
    %955 = vmatmul.mubr.bf16.gmra.mrb[0].mxu0 %v880
    %v956 = vpop.f32.mrb[0].mxu0
    %v957 = vadd.f32 0.0, %v956
    %v958 = vpop.f32.mrb[0].mxu0
    %v959 = vpop.f32.mrb[0].mxu0
    %v960 = vpop.f32.mrb[0].mxu0
    %961 = vdwg.mxu0
    %v962 = vadd.f32 %v877, %v916
    %v963 = vxor.u32 %v962, 2147483648
    %v964 = vmul.f32 %v963, 1.442695
    %v965 = vpow.pop %v964
    %v966 = vadd.f32 %v965, 1.0
    %v967 = vrcp.pop %v966
    %v968 = vmul.f32 1.0, %v967
    %v969 = vadd.f32 %v878, %v918
    %v970 = vxor.u32 %v969, 2147483648
    %v971 = vmul.f32 %v970, 1.442695
    %v972 = vpow.pop %v971
    %v973 = vadd.f32 %v972, 1.0
    %v974 = vrcp.pop %v973
    %v975 = vmul.f32 1.0, %v974
    %v976 = vadd.f32 %v957, %v635
    %v977 = vmul.f32 %v968, %v976
    %v978 = vadd.f32 %v879, %v977
    %v979 = vtanh.pop %v978
    %v980 = vsub.f32 1.0, %v975
    %v981 = vmul.f32 %v980, %v979
    %v982 = vmul.f32 %v975, %v873
    %v983 = vadd.f32 %v981, %v982
    %s984 = smul.u32 2, 3
    %s985 = smul.addr %s984, 8
    %s986 = scalar_lea.vmem [#allocation2], %s985
    %v987 = vld [vmem:[%s986] sm:$0xff]
    %v988 = vld [vmem:[%s986 + $0x8] sm:$0xff]
    %v989 = vld [vmem:[%s986 + $0x10] sm:$0xff]
    %v990 = vpack.c.bf16 %v983, %v983
    %991 = vmatprep.subr.bf16.mxu0 %v724
    %992 = vmatpush1.bf16.msra.mxu0 %v723
    %993 = vmatprep.subr.bf16.mxu0 %v727
    %994 = vmatpush1.bf16.msra.mxu0 %v726
    %995 = vmatprep.subr.bf16.mxu0 %v730
    %996 = vmatpush1.bf16.msra.mxu0 %v729
    %997 = vmatprep.subr.bf16.mxu0 %v733
    %998 = vmatpush1.bf16.msra.mxu0 %v732
    %999 = vmatprep.subr.bf16.mxu0 %v736
    %1000 = vmatpush1.bf16.msra.mxu0 %v735
    %1001 = vmatprep.subr.bf16.mxu0 %v739
    %1002 = vmatpush1.bf16.msra.mxu0 %v738
    %1003 = vmatprep.subr.bf16.mxu0 %v742
    %1004 = vmatpush1.bf16.msra.mxu0 %v741
    %1005 = vmatprep.subr.bf16.mxu0 %v745
    %1006 = vmatpush1.bf16.msra.mxu0 %v744
    %1007 = vmatprep.subr.bf16.mxu0 0
    %1008 = vmatpush1.bf16.msra.mxu0 0
    %1009 = vmatprep.subr.bf16.mxu0 0
    %1010 = vmatpush1.bf16.msra.mxu0 0
    %1011 = vmatprep.subr.bf16.mxu0 0
    %1012 = vmatpush1.bf16.msra.mxu0 0
    %1013 = vmatprep.subr.bf16.mxu0 0
    %1014 = vmatpush1.bf16.msra.mxu0 0
    %1015 = vmatprep.subr.bf16.mxu0 0
    %1016 = vmatpush1.bf16.msra.mxu0 0
    %1017 = vmatprep.subr.bf16.mxu0 0
    %1018 = vmatpush1.bf16.msra.mxu0 0
    %1019 = vmatprep.subr.bf16.mxu0 0
    %1020 = vmatpush1.bf16.msra.mxu0 0
    %1021 = vmatprep.subr.bf16.mxu0 0
    %1022 = vmatpush1.bf16.msra.mxu0 0
    %1023 = vmatprep.mubr.bf16.mxu0 0
    %1024 = vmatmul.mubr.bf16.gmra.mrb[0].mxu0 %v990
    %v1025 = vpop.f32.mrb[0].mxu0
    %v1026 = vadd.f32 0.0, %v1025
    %v1027 = vpop.f32.mrb[0].mxu0
    %v1028 = vadd.f32 0.0, %v1027
    %v1029 = vpop.f32.mrb[0].mxu0
    %v1030 = vpop.f32.mrb[0].mxu0
    %1031 = vdwg.mxu0
    %1032 = vmatprep.subr.bf16.mxu0 0
    %1033 = vmatpush1.bf16.msra.mxu0 %v725
    %1034 = vmatprep.subr.bf16.mxu0 0
    %1035 = vmatpush1.bf16.msra.mxu0 %v728
    %1036 = vmatprep.subr.bf16.mxu0 0
    %1037 = vmatpush1.bf16.msra.mxu0 %v731
    %1038 = vmatprep.subr.bf16.mxu0 0
    %1039 = vmatpush1.bf16.msra.mxu0 %v734
    %1040 = vmatprep.subr.bf16.mxu0 0
    %1041 = vmatpush1.bf16.msra.mxu0 %v737
    %1042 = vmatprep.subr.bf16.mxu0 0
    %1043 = vmatpush1.bf16.msra.mxu0 %v740
    %1044 = vmatprep.subr.bf16.mxu0 0
    %1045 = vmatpush1.bf16.msra.mxu0 %v743
    %1046 = vmatprep.subr.bf16.mxu0 0
    %1047 = vmatpush1.bf16.msra.mxu0 %v746
    %1048 = vmatprep.subr.bf16.mxu0 0
    %1049 = vmatpush1.bf16.msra.mxu0 0
    %1050 = vmatprep.subr.bf16.mxu0 0
    %1051 = vmatpush1.bf16.msra.mxu0 0
    %1052 = vmatprep.subr.bf16.mxu0 0
    %1053 = vmatpush1.bf16.msra.mxu0 0
    %1054 = vmatprep.subr.bf16.mxu0 0
    %1055 = vmatpush1.bf16.msra.mxu0 0
    %1056 = vmatprep.subr.bf16.mxu0 0
    %1057 = vmatpush1.bf16.msra.mxu0 0
    %1058 = vmatprep.subr.bf16.mxu0 0
    %1059 = vmatpush1.bf16.msra.mxu0 0
    %1060 = vmatprep.subr.bf16.mxu0 0
    %1061 = vmatpush1.bf16.msra.mxu0 0
    %1062 = vmatprep.subr.bf16.mxu0 0
    %1063 = vmatpush1.bf16.msra.mxu0 0
    %1064 = vmatprep.mubr.bf16.mxu0 0
    %1065 = vmatmul.mubr.bf16.gmra.mrb[0].mxu0 %v990
    %v1066 = vpop.f32.mrb[0].mxu0
    %v1067 = vadd.f32 0.0, %v1066
    %v1068 = vpop.f32.mrb[0].mxu0
    %v1069 = vpop.f32.mrb[0].mxu0
    %v1070 = vpop.f32.mrb[0].mxu0
    %1071 = vdwg.mxu0
    %v1072 = vadd.f32 %v987, %v1026
    %v1073 = vxor.u32 %v1072, 2147483648
    %v1074 = vmul.f32 %v1073, 1.442695
    %v1075 = vpow.pop %v1074
    %v1076 = vadd.f32 %v1075, 1.0
    %v1077 = vrcp.pop %v1076
    %v1078 = vmul.f32 1.0, %v1077
    %v1079 = vadd.f32 %v988, %v1028
    %v1080 = vxor.u32 %v1079, 2147483648
    %v1081 = vmul.f32 %v1080, 1.442695
    %v1082 = vpow.pop %v1081
    %v1083 = vadd.f32 %v1082, 1.0
    %v1084 = vrcp.pop %v1083
    %v1085 = vmul.f32 1.0, %v1084
    %v1086 = vadd.f32 %v1067, %v635
    %v1087 = vmul.f32 %v1078, %v1086
    %v1088 = vadd.f32 %v989, %v1087
    %v1089 = vtanh.pop %v1088
    %v1090 = vsub.f32 1.0, %v1085
    %v1091 = vmul.f32 %v1090, %v1089
    %v1092 = vmul.f32 %v1085, %v983
    %v1093 = vadd.f32 %v1091, %v1092
    %s1094 = smul.u32 3, 3
    %s1095 = smul.addr %s1094, 8
    %s1096 = scalar_lea.vmem [#allocation2], %s1095
    %v1097 = vld [vmem:[%s1096] sm:$0xff]
    %v1098 = vld [vmem:[%s1096 + $0x8] sm:$0xff]
    %v1099 = vld [vmem:[%s1096 + $0x10] sm:$0xff]
    %v1100 = vpack.c.bf16 %v1093, %v1093
    %1101 = vmatprep.subr.bf16.mxu0 %v724
    %1102 = vmatpush1.bf16.msra.mxu0 %v723
    %1103 = vmatprep.subr.bf16.mxu0 %v727
    %1104 = vmatpush1.bf16.msra.mxu0 %v726
    %1105 = vmatprep.subr.bf16.mxu0 %v730
    %1106 = vmatpush1.bf16.msra.mxu0 %v729
    %1107 = vmatprep.subr.bf16.mxu0 %v733
    %1108 = vmatpush1.bf16.msra.mxu0 %v732
    %1109 = vmatprep.subr.bf16.mxu0 %v736
    %1110 = vmatpush1.bf16.msra.mxu0 %v735
    %1111 = vmatprep.subr.bf16.mxu0 %v739
    %1112 = vmatpush1.bf16.msra.mxu0 %v738
    %1113 = vmatprep.subr.bf16.mxu0 %v742
    %1114 = vmatpush1.bf16.msra.mxu0 %v741
    %1115 = vmatprep.subr.bf16.mxu0 %v745
    %1116 = vmatpush1.bf16.msra.mxu0 %v744
    %1117 = vmatprep.subr.bf16.mxu0 0
    %1118 = vmatpush1.bf16.msra.mxu0 0
    %1119 = vmatprep.subr.bf16.mxu0 0
    %1120 = vmatpush1.bf16.msra.mxu0 0
    %1121 = vmatprep.subr.bf16.mxu0 0
    %1122 = vmatpush1.bf16.msra.mxu0 0
    %1123 = vmatprep.subr.bf16.mxu0 0
    %1124 = vmatpush1.bf16.msra.mxu0 0
    %1125 = vmatprep.subr.bf16.mxu0 0
    %1126 = vmatpush1.bf16.msra.mxu0 0
    %1127 = vmatprep.subr.bf16.mxu0 0
    %1128 = vmatpush1.bf16.msra.mxu0 0
    %1129 = vmatprep.subr.bf16.mxu0 0
    %1130 = vmatpush1.bf16.msra.mxu0 0
    %1131 = vmatprep.subr.bf16.mxu0 0
    %1132 = vmatpush1.bf16.msra.mxu0 0
    %1133 = vmatprep.mubr.bf16.mxu0 0
    %1134 = vmatmul.mubr.bf16.gmra.mrb[0].mxu0 %v1100
    %v1135 = vpop.f32.mrb[0].mxu0
    %v1136 = vadd.f32 0.0, %v1135
    %v1137 = vpop.f32.mrb[0].mxu0
    %v1138 = vadd.f32 0.0, %v1137
    %v1139 = vpop.f32.mrb[0].mxu0
    %v1140 = vpop.f32.mrb[0].mxu0
    %1141 = vdwg.mxu0
    %1142 = vmatprep.subr.bf16.mxu0 0
    %1143 = vmatpush1.bf16.msra.mxu0 %v725
    %1144 = vmatprep.subr.bf16.mxu0 0
    %1145 = vmatpush1.bf16.msra.mxu0 %v728
    %1146 = vmatprep.subr.bf16.mxu0 0
    %1147 = vmatpush1.bf16.msra.mxu0 %v731
    %1148 = vmatprep.subr.bf16.mxu0 0
    %1149 = vmatpush1.bf16.msra.mxu0 %v734
    %1150 = vmatprep.subr.bf16.mxu0 0
    %1151 = vmatpush1.bf16.msra.mxu0 %v737
    %1152 = vmatprep.subr.bf16.mxu0 0
    %1153 = vmatpush1.bf16.msra.mxu0 %v740
    %1154 = vmatprep.subr.bf16.mxu0 0
    %1155 = vmatpush1.bf16.msra.mxu0 %v743
    %1156 = vmatprep.subr.bf16.mxu0 0
    %1157 = vmatpush1.bf16.msra.mxu0 %v746
    %1158 = vmatprep.subr.bf16.mxu0 0
    %1159 = vmatpush1.bf16.msra.mxu0 0
    %1160 = vmatprep.subr.bf16.mxu0 0
    %1161 = vmatpush1.bf16.msra.mxu0 0
    %1162 = vmatprep.subr.bf16.mxu0 0
    %1163 = vmatpush1.bf16.msra.mxu0 0
    %1164 = vmatprep.subr.bf16.mxu0 0
    %1165 = vmatpush1.bf16.msra.mxu0 0
    %1166 = vmatprep.subr.bf16.mxu0 0
    %1167 = vmatpush1.bf16.msra.mxu0 0
    %1168 = vmatprep.subr.bf16.mxu0 0
    %1169 = vmatpush1.bf16.msra.mxu0 0
    %1170 = vmatprep.subr.bf16.mxu0 0
    %1171 = vmatpush1.bf16.msra.mxu0 0
    %1172 = vmatprep.subr.bf16.mxu0 0
    %1173 = vmatpush1.bf16.msra.mxu0 0
    %1174 = vmatprep.mubr.bf16.mxu0 0
    %1175 = vmatmul.mubr.bf16.gmra.mrb[0].mxu0 %v1100
    %v1176 = vpop.f32.mrb[0].mxu0
    %v1177 = vadd.f32 0.0, %v1176
    %v1178 = vpop.f32.mrb[0].mxu0
    %v1179 = vpop.f32.mrb[0].mxu0
    %v1180 = vpop.f32.mrb[0].mxu0
    %1181 = vdwg.mxu0
    %v1182 = vadd.f32 %v1097, %v1136
    %v1183 = vxor.u32 %v1182, 2147483648
    %v1184 = vmul.f32 %v1183, 1.442695
    %v1185 = vpow.pop %v1184
    %v1186 = vadd.f32 %v1185, 1.0
    %v1187 = vrcp.pop %v1186
    %v1188 = vmul.f32 1.0, %v1187
    %v1189 = vadd.f32 %v1098, %v1138
    %v1190 = vxor.u32 %v1189, 2147483648
    %v1191 = vmul.f32 %v1190, 1.442695
    %v1192 = vpow.pop %v1191
    %v1193 = vadd.f32 %v1192, 1.0
    %v1194 = vrcp.pop %v1193
    %v1195 = vmul.f32 1.0, %v1194
    %v1196 = vadd.f32 %v1177, %v635
    %v1197 = vmul.f32 %v1188, %v1196
    %v1198 = vadd.f32 %v1099, %v1197
    %v1199 = vtanh.pop %v1198
    %v1200 = vsub.f32 1.0, %v1195
    %v1201 = vmul.f32 %v1200, %v1199
    %v1202 = vmul.f32 %v1195, %v1093
    %v1203 = vadd.f32 %v1201, %v1202
    %s1204 = smul.u32 4, 3
    %s1205 = smul.addr %s1204, 8
    %s1206 = scalar_lea.vmem [#allocation2], %s1205
    %v1207 = vld [vmem:[%s1206] sm:$0xff]
    %v1208 = vld [vmem:[%s1206 + $0x8] sm:$0xff]
    %v1209 = vld [vmem:[%s1206 + $0x10] sm:$0xff]
    %v1210 = vpack.c.bf16 %v1203, %v1203
    %1211 = vmatprep.subr.bf16.mxu0 %v724
    %1212 = vmatpush1.bf16.msra.mxu0 %v723
    %1213 = vmatprep.subr.bf16.mxu0 %v727
    %1214 = vmatpush1.bf16.msra.mxu0 %v726
    %1215 = vmatprep.subr.bf16.mxu0 %v730
    %1216 = vmatpush1.bf16.msra.mxu0 %v729
    %1217 = vmatprep.subr.bf16.mxu0 %v733
    %1218 = vmatpush1.bf16.msra.mxu0 %v732
    %1219 = vmatprep.subr.bf16.mxu0 %v736
    %1220 = vmatpush1.bf16.msra.mxu0 %v735
    %1221 = vmatprep.subr.bf16.mxu0 %v739
    %1222 = vmatpush1.bf16.msra.mxu0 %v738
    %1223 = vmatprep.subr.bf16.mxu0 %v742
    %1224 = vmatpush1.bf16.msra.mxu0 %v741
    %1225 = vmatprep.subr.bf16.mxu0 %v745
    %1226 = vmatpush1.bf16.msra.mxu0 %v744
    %1227 = vmatprep.subr.bf16.mxu0 0
    %1228 = vmatpush1.bf16.msra.mxu0 0
    %1229 = vmatprep.subr.bf16.mxu0 0
    %1230 = vmatpush1.bf16.msra.mxu0 0
    %1231 = vmatprep.subr.bf16.mxu0 0
    %1232 = vmatpush1.bf16.msra.mxu0 0
    %1233 = vmatprep.subr.bf16.mxu0 0
    %1234 = vmatpush1.bf16.msra.mxu0 0
    %1235 = vmatprep.subr.bf16.mxu0 0
    %1236 = vmatpush1.bf16.msra.mxu0 0
    %1237 = vmatprep.subr.bf16.mxu0 0
    %1238 = vmatpush1.bf16.msra.mxu0 0
    %1239 = vmatprep.subr.bf16.mxu0 0
    %1240 = vmatpush1.bf16.msra.mxu0 0
    %1241 = vmatprep.subr.bf16.mxu0 0
    %1242 = vmatpush1.bf16.msra.mxu0 0
    %1243 = vmatprep.mubr.bf16.mxu0 0
    %1244 = vmatmul.mubr.bf16.gmra.mrb[0].mxu0 %v1210
    %v1245 = vpop.f32.mrb[0].mxu0
    %v1246 = vadd.f32 0.0, %v1245
    %v1247 = vpop.f32.mrb[0].mxu0
    %v1248 = vadd.f32 0.0, %v1247
    %v1249 = vpop.f32.mrb[0].mxu0
    %v1250 = vpop.f32.mrb[0].mxu0
    %1251 = vdwg.mxu0
    %1252 = vmatprep.subr.bf16.mxu0 0
    %1253 = vmatpush1.bf16.msra.mxu0 %v725
    %1254 = vmatprep.subr.bf16.mxu0 0
    %1255 = vmatpush1.bf16.msra.mxu0 %v728
    %1256 = vmatprep.subr.bf16.mxu0 0
    %1257 = vmatpush1.bf16.msra.mxu0 %v731
    %1258 = vmatprep.subr.bf16.mxu0 0
    %1259 = vmatpush1.bf16.msra.mxu0 %v734
    %1260 = vmatprep.subr.bf16.mxu0 0
    %1261 = vmatpush1.bf16.msra.mxu0 %v737
    %1262 = vmatprep.subr.bf16.mxu0 0
    %1263 = vmatpush1.bf16.msra.mxu0 %v740
    %1264 = vmatprep.subr.bf16.mxu0 0
    %1265 = vmatpush1.bf16.msra.mxu0 %v743
    %1266 = vmatprep.subr.bf16.mxu0 0
    %1267 = vmatpush1.bf16.msra.mxu0 %v746
    %1268 = vmatprep.subr.bf16.mxu0 0
    %1269 = vmatpush1.bf16.msra.mxu0 0
    %1270 = vmatprep.subr.bf16.mxu0 0
    %1271 = vmatpush1.bf16.msra.mxu0 0
    %1272 = vmatprep.subr.bf16.mxu0 0
    %1273 = vmatpush1.bf16.msra.mxu0 0
    %1274 = vmatprep.subr.bf16.mxu0 0
    %1275 = vmatpush1.bf16.msra.mxu0 0
    %1276 = vmatprep.subr.bf16.mxu0 0
    %1277 = vmatpush1.bf16.msra.mxu0 0
    %1278 = vmatprep.subr.bf16.mxu0 0
    %1279 = vmatpush1.bf16.msra.mxu0 0
    %1280 = vmatprep.subr.bf16.mxu0 0
    %1281 = vmatpush1.bf16.msra.mxu0 0
    %1282 = vmatprep.subr.bf16.mxu0 0
    %1283 = vmatpush1.bf16.msra.mxu0 0
    %1284 = vmatprep.mubr.bf16.mxu0 0
    %1285 = vmatmul.mubr.bf16.gmra.mrb[0].mxu0 %v1210
    %v1286 = vpop.f32.mrb[0].mxu0
    %v1287 = vadd.f32 0.0, %v1286
    %v1288 = vpop.f32.mrb[0].mxu0
    %v1289 = vpop.f32.mrb[0].mxu0
    %v1290 = vpop.f32.mrb[0].mxu0
    %1291 = vdwg.mxu0
    %v1292 = vadd.f32 %v1207, %v1246
    %v1293 = vxor.u32 %v1292, 2147483648
    %v1294 = vmul.f32 %v1293, 1.442695
    %v1295 = vpow.pop %v1294
    %v1296 = vadd.f32 %v1295, 1.0
    %v1297 = vrcp.pop %v1296
    %v1298 = vmul.f32 1.0, %v1297
    %v1299 = vadd.f32 %v1208, %v1248
    %v1300 = vxor.u32 %v1299, 2147483648
    %v1301 = vmul.f32 %v1300, 1.442695
    %v1302 = vpow.pop %v1301
    %v1303 = vadd.f32 %v1302, 1.0
    %v1304 = vrcp.pop %v1303
    %v1305 = vmul.f32 1.0, %v1304
    %v1306 = vadd.f32 %v1287, %v635
    %v1307 = vmul.f32 %v1298, %v1306
    %v1308 = vadd.f32 %v1209, %v1307
    %v1309 = vtanh.pop %v1308
    %v1310 = vsub.f32 1.0, %v1305
    %v1311 = vmul.f32 %v1310, %v1309
    %v1312 = vmul.f32 %v1305, %v1203
    %v1313 = vadd.f32 %v1311, %v1312
    %s1314 = smul.u32 5, 3
    %s1315 = smul.addr %s1314, 8
    %s1316 = scalar_lea.vmem [#allocation2], %s1315
    %v1317 = vld [vmem:[%s1316] sm:$0xff]
    %v1318 = vld [vmem:[%s1316 + $0x8] sm:$0xff]
    %v1319 = vld [vmem:[%s1316 + $0x10] sm:$0xff]
    %v1320 = vpack.c.bf16 %v1313, %v1313
    %1321 = vmatprep.subr.bf16.mxu0 %v724
    %1322 = vmatpush1.bf16.msra.mxu0 %v723
    %1323 = vmatprep.subr.bf16.mxu0 %v727
    %1324 = vmatpush1.bf16.msra.mxu0 %v726
    %1325 = vmatprep.subr.bf16.mxu0 %v730
    %1326 = vmatpush1.bf16.msra.mxu0 %v729
    %1327 = vmatprep.subr.bf16.mxu0 %v733
    %1328 = vmatpush1.bf16.msra.mxu0 %v732
    %1329 = vmatprep.subr.bf16.mxu0 %v736
    %1330 = vmatpush1.bf16.msra.mxu0 %v735
    %1331 = vmatprep.subr.bf16.mxu0 %v739
    %1332 = vmatpush1.bf16.msra.mxu0 %v738
    %1333 = vmatprep.subr.bf16.mxu0 %v742
    %1334 = vmatpush1.bf16.msra.mxu0 %v741
    %1335 = vmatprep.subr.bf16.mxu0 %v745
    %1336 = vmatpush1.bf16.msra.mxu0 %v744
    %1337 = vmatprep.subr.bf16.mxu0 0
    %1338 = vmatpush1.bf16.msra.mxu0 0
    %1339 = vmatprep.subr.bf16.mxu0 0
    %1340 = vmatpush1.bf16.msra.mxu0 0
    %1341 = vmatprep.subr.bf16.mxu0 0
    %1342 = vmatpush1.bf16.msra.mxu0 0
    %1343 = vmatprep.subr.bf16.mxu0 0
    %1344 = vmatpush1.bf16.msra.mxu0 0
    %1345 = vmatprep.subr.bf16.mxu0 0
    %1346 = vmatpush1.bf16.msra.mxu0 0
    %1347 = vmatprep.subr.bf16.mxu0 0
    %1348 = vmatpush1.bf16.msra.mxu0 0
    %1349 = vmatprep.subr.bf16.mxu0 0
    %1350 = vmatpush1.bf16.msra.mxu0 0
    %1351 = vmatprep.subr.bf16.mxu0 0
    %1352 = vmatpush1.bf16.msra.mxu0 0
    %1353 = vmatprep.mubr.bf16.mxu0 0
    %1354 = vmatmul.mubr.bf16.gmra.mrb[0].mxu0 %v1320
    %v1355 = vpop.f32.mrb[0].mxu0
    %v1356 = vadd.f32 0.0, %v1355
    %v1357 = vpop.f32.mrb[0].mxu0
    %v1358 = vadd.f32 0.0, %v1357
    %v1359 = vpop.f32.mrb[0].mxu0
    %v1360 = vpop.f32.mrb[0].mxu0
    %1361 = vdwg.mxu0
    %1362 = vmatprep.subr.bf16.mxu0 0
    %1363 = vmatpush1.bf16.msra.mxu0 %v725
    %1364 = vmatprep.subr.bf16.mxu0 0
    %1365 = vmatpush1.bf16.msra.mxu0 %v728
    %1366 = vmatprep.subr.bf16.mxu0 0
    %1367 = vmatpush1.bf16.msra.mxu0 %v731
    %1368 = vmatprep.subr.bf16.mxu0 0
    %1369 = vmatpush1.bf16.msra.mxu0 %v734
    %1370 = vmatprep.subr.bf16.mxu0 0
    %1371 = vmatpush1.bf16.msra.mxu0 %v737
    %1372 = vmatprep.subr.bf16.mxu0 0
    %1373 = vmatpush1.bf16.msra.mxu0 %v740
    %1374 = vmatprep.subr.bf16.mxu0 0
    %1375 = vmatpush1.bf16.msra.mxu0 %v743
    %1376 = vmatprep.subr.bf16.mxu0 0
    %1377 = vmatpush1.bf16.msra.mxu0 %v746
    %1378 = vmatprep.subr.bf16.mxu0 0
    %1379 = vmatpush1.bf16.msra.mxu0 0
    %1380 = vmatprep.subr.bf16.mxu0 0
    %1381 = vmatpush1.bf16.msra.mxu0 0
    %1382 = vmatprep.subr.bf16.mxu0 0
    %1383 = vmatpush1.bf16.msra.mxu0 0
    %1384 = vmatprep.subr.bf16.mxu0 0
    %1385 = vmatpush1.bf16.msra.mxu0 0
    %1386 = vmatprep.subr.bf16.mxu0 0
    %1387 = vmatpush1.bf16.msra.mxu0 0
    %1388 = vmatprep.subr.bf16.mxu0 0
    %1389 = vmatpush1.bf16.msra.mxu0 0
    %1390 = vmatprep.subr.bf16.mxu0 0
    %1391 = vmatpush1.bf16.msra.mxu0 0
    %1392 = vmatprep.subr.bf16.mxu0 0
    %1393 = vmatpush1.bf16.msra.mxu0 0
    %1394 = vmatprep.mubr.bf16.mxu0 0
    %1395 = vmatmul.mubr.bf16.gmra.mrb[0].mxu0 %v1320
    %v1396 = vpop.f32.mrb[0].mxu0
    %v1397 = vadd.f32 0.0, %v1396
    %v1398 = vpop.f32.mrb[0].mxu0
    %v1399 = vpop.f32.mrb[0].mxu0
    %v1400 = vpop.f32.mrb[0].mxu0
    %1401 = vdwg.mxu0
    %v1402 = vadd.f32 %v1317, %v1356
    %v1403 = vxor.u32 %v1402, 2147483648
    %v1404 = vmul.f32 %v1403, 1.442695
    %v1405 = vpow.pop %v1404
    %v1406 = vadd.f32 %v1405, 1.0
    %v1407 = vrcp.pop %v1406
    %v1408 = vmul.f32 1.0, %v1407
    %v1409 = vadd.f32 %v1318, %v1358
    %v1410 = vxor.u32 %v1409, 2147483648
    %v1411 = vmul.f32 %v1410, 1.442695
    %v1412 = vpow.pop %v1411
    %v1413 = vadd.f32 %v1412, 1.0
    %v1414 = vrcp.pop %v1413
    %v1415 = vmul.f32 1.0, %v1414
    %v1416 = vadd.f32 %v1397, %v635
    %v1417 = vmul.f32 %v1408, %v1416
    %v1418 = vadd.f32 %v1319, %v1417
    %v1419 = vtanh.pop %v1418
    %v1420 = vsub.f32 1.0, %v1415
    %v1421 = vmul.f32 %v1420, %v1419
    %v1422 = vmul.f32 %v1415, %v1313
    %v1423 = vadd.f32 %v1421, %v1422
    %s1424 = smul.u32 6, 3
    %s1425 = smul.addr %s1424, 8
    %s1426 = scalar_lea.vmem [#allocation2], %s1425
    %v1427 = vld [vmem:[%s1426] sm:$0xff]
    %v1428 = vld [vmem:[%s1426 + $0x8] sm:$0xff]
    %v1429 = vld [vmem:[%s1426 + $0x10] sm:$0xff]
    %v1430 = vpack.c.bf16 %v1423, %v1423
    %1431 = vmatprep.subr.bf16.mxu0 %v724
    %1432 = vmatpush1.bf16.msra.mxu0 %v723
    %1433 = vmatprep.subr.bf16.mxu0 %v727
    %1434 = vmatpush1.bf16.msra.mxu0 %v726
    %1435 = vmatprep.subr.bf16.mxu0 %v730
    %1436 = vmatpush1.bf16.msra.mxu0 %v729
    %1437 = vmatprep.subr.bf16.mxu0 %v733
    %1438 = vmatpush1.bf16.msra.mxu0 %v732
    %1439 = vmatprep.subr.bf16.mxu0 %v736
    %1440 = vmatpush1.bf16.msra.mxu0 %v735
    %1441 = vmatprep.subr.bf16.mxu0 %v739
    %1442 = vmatpush1.bf16.msra.mxu0 %v738
    %1443 = vmatprep.subr.bf16.mxu0 %v742
    %1444 = vmatpush1.bf16.msra.mxu0 %v741
    %1445 = vmatprep.subr.bf16.mxu0 %v745
    %1446 = vmatpush1.bf16.msra.mxu0 %v744
    %1447 = vmatprep.subr.bf16.mxu0 0
    %1448 = vmatpush1.bf16.msra.mxu0 0
    %1449 = vmatprep.subr.bf16.mxu0 0
    %1450 = vmatpush1.bf16.msra.mxu0 0
    %1451 = vmatprep.subr.bf16.mxu0 0
    %1452 = vmatpush1.bf16.msra.mxu0 0
    %1453 = vmatprep.subr.bf16.mxu0 0
    %1454 = vmatpush1.bf16.msra.mxu0 0
    %1455 = vmatprep.subr.bf16.mxu0 0
    %1456 = vmatpush1.bf16.msra.mxu0 0
    %1457 = vmatprep.subr.bf16.mxu0 0
    %1458 = vmatpush1.bf16.msra.mxu0 0
    %1459 = vmatprep.subr.bf16.mxu0 0
    %1460 = vmatpush1.bf16.msra.mxu0 0
    %1461 = vmatprep.subr.bf16.mxu0 0
    %1462 = vmatpush1.bf16.msra.mxu0 0
    %1463 = vmatprep.mubr.bf16.mxu0 0
    %1464 = vmatmul.mubr.bf16.gmra.mrb[0].mxu0 %v1430
    %v1465 = vpop.f32.mrb[0].mxu0
    %v1466 = vadd.f32 0.0, %v1465
    %v1467 = vpop.f32.mrb[0].mxu0
    %v1468 = vadd.f32 0.0, %v1467
    %v1469 = vpop.f32.mrb[0].mxu0
    %v1470 = vpop.f32.mrb[0].mxu0
    %1471 = vdwg.mxu0
    %1472 = vmatprep.subr.bf16.mxu0 0
    %1473 = vmatpush1.bf16.msra.mxu0 %v725
    %1474 = vmatprep.subr.bf16.mxu0 0
    %1475 = vmatpush1.bf16.msra.mxu0 %v728
    %1476 = vmatprep.subr.bf16.mxu0 0
    %1477 = vmatpush1.bf16.msra.mxu0 %v731
    %1478 = vmatprep.subr.bf16.mxu0 0
    %1479 = vmatpush1.bf16.msra.mxu0 %v734
    %1480 = vmatprep.subr.bf16.mxu0 0
    %1481 = vmatpush1.bf16.msra.mxu0 %v737
    %1482 = vmatprep.subr.bf16.mxu0 0
    %1483 = vmatpush1.bf16.msra.mxu0 %v740
    %1484 = vmatprep.subr.bf16.mxu0 0
    %1485 = vmatpush1.bf16.msra.mxu0 %v743
    %1486 = vmatprep.subr.bf16.mxu0 0
    %1487 = vmatpush1.bf16.msra.mxu0 %v746
    %1488 = vmatprep.subr.bf16.mxu0 0
    %1489 = vmatpush1.bf16.msra.mxu0 0
    %1490 = vmatprep.subr.bf16.mxu0 0
    %1491 = vmatpush1.bf16.msra.mxu0 0
    %1492 = vmatprep.subr.bf16.mxu0 0
    %1493 = vmatpush1.bf16.msra.mxu0 0
    %1494 = vmatprep.subr.bf16.mxu0 0
    %1495 = vmatpush1.bf16.msra.mxu0 0
    %1496 = vmatprep.subr.bf16.mxu0 0
    %1497 = vmatpush1.bf16.msra.mxu0 0
    %1498 = vmatprep.subr.bf16.mxu0 0
    %1499 = vmatpush1.bf16.msra.mxu0 0
    %1500 = vmatprep.subr.bf16.mxu0 0
    %1501 = vmatpush1.bf16.msra.mxu0 0
    %1502 = vmatprep.subr.bf16.mxu0 0
    %1503 = vmatpush1.bf16.msra.mxu0 0
    %1504 = vmatprep.mubr.bf16.mxu0 0
    %1505 = vmatmul.mubr.bf16.gmra.mrb[0].mxu0 %v1430
    %v1506 = vpop.f32.mrb[0].mxu0
    %v1507 = vadd.f32 0.0, %v1506
    %v1508 = vpop.f32.mrb[0].mxu0
    %v1509 = vpop.f32.mrb[0].mxu0
    %v1510 = vpop.f32.mrb[0].mxu0
    %1511 = vdwg.mxu0
    %v1512 = vadd.f32 %v1427, %v1466
    %v1513 = vxor.u32 %v1512, 2147483648
    %v1514 = vmul.f32 %v1513, 1.442695
    %v1515 = vpow.pop %v1514
    %v1516 = vadd.f32 %v1515, 1.0
    %v1517 = vrcp.pop %v1516
    %v1518 = vmul.f32 1.0, %v1517
    %v1519 = vadd.f32 %v1428, %v1468
    %v1520 = vxor.u32 %v1519, 2147483648
    %v1521 = vmul.f32 %v1520, 1.442695
    %v1522 = vpow.pop %v1521
    %v1523 = vadd.f32 %v1522, 1.0
    %v1524 = vrcp.pop %v1523
    %v1525 = vmul.f32 1.0, %v1524
    %v1526 = vadd.f32 %v1507, %v635
    %v1527 = vmul.f32 %v1518, %v1526
    %v1528 = vadd.f32 %v1429, %v1527
    %v1529 = vtanh.pop %v1528
    %v1530 = vsub.f32 1.0, %v1525
    %v1531 = vmul.f32 %v1530, %v1529
    %v1532 = vmul.f32 %v1525, %v1423
    %v1533 = vadd.f32 %v1531, %v1532
    %s1534 = smul.u32 7, 3
    %s1535 = smul.addr %s1534, 8
    %s1536 = scalar_lea.vmem [#allocation2], %s1535
    %v1537 = vld [vmem:[%s1536] sm:$0xff]
    %v1538 = vld [vmem:[%s1536 + $0x8] sm:$0xff]
    %v1539 = vld [vmem:[%s1536 + $0x10] sm:$0xff]
    %v1540 = vpack.c.bf16 %v1533, %v1533
    %1541 = vmatprep.subr.bf16.mxu0 %v724
    %1542 = vmatpush1.bf16.msra.mxu0 %v723
    %1543 = vmatprep.subr.bf16.mxu0 %v727
    %1544 = vmatpush1.bf16.msra.mxu0 %v726
    %1545 = vmatprep.subr.bf16.mxu0 %v730
    %1546 = vmatpush1.bf16.msra.mxu0 %v729
    %1547 = vmatprep.subr.bf16.mxu0 %v733
    %1548 = vmatpush1.bf16.msra.mxu0 %v732
    %1549 = vmatprep.subr.bf16.mxu0 %v736
    %1550 = vmatpush1.bf16.msra.mxu0 %v735
    %1551 = vmatprep.subr.bf16.mxu0 %v739
    %1552 = vmatpush1.bf16.msra.mxu0 %v738
    %1553 = vmatprep.subr.bf16.mxu0 %v742
    %1554 = vmatpush1.bf16.msra.mxu0 %v741
    %1555 = vmatprep.subr.bf16.mxu0 %v745
    %1556 = vmatpush1.bf16.msra.mxu0 %v744
    %1557 = vmatprep.subr.bf16.mxu0 0
    %1558 = vmatpush1.bf16.msra.mxu0 0
    %1559 = vmatprep.subr.bf16.mxu0 0
    %1560 = vmatpush1.bf16.msra.mxu0 0
    %1561 = vmatprep.subr.bf16.mxu0 0
    %1562 = vmatpush1.bf16.msra.mxu0 0
    %1563 = vmatprep.subr.bf16.mxu0 0
    %1564 = vmatpush1.bf16.msra.mxu0 0
    %1565 = vmatprep.subr.bf16.mxu0 0
    %1566 = vmatpush1.bf16.msra.mxu0 0
    %1567 = vmatprep.subr.bf16.mxu0 0
    %1568 = vmatpush1.bf16.msra.mxu0 0
    %1569 = vmatprep.subr.bf16.mxu0 0
    %1570 = vmatpush1.bf16.msra.mxu0 0
    %1571 = vmatprep.subr.bf16.mxu0 0
    %1572 = vmatpush1.bf16.msra.mxu0 0
    %1573 = vmatprep.mubr.bf16.mxu0 0
    %1574 = vmatmul.mubr.bf16.gmra.mrb[0].mxu0 %v1540
    %v1575 = vpop.f32.mrb[0].mxu0
    %v1576 = vadd.f32 0.0, %v1575
    %v1577 = vpop.f32.mrb[0].mxu0
    %v1578 = vadd.f32 0.0, %v1577
    %v1579 = vpop.f32.mrb[0].mxu0
    %v1580 = vpop.f32.mrb[0].mxu0
    %1581 = vdwg.mxu0
    %1582 = vmatprep.subr.bf16.mxu0 0
    %1583 = vmatpush1.bf16.msra.mxu0 %v725
    %1584 = vmatprep.subr.bf16.mxu0 0
    %1585 = vmatpush1.bf16.msra.mxu0 %v728
    %1586 = vmatprep.subr.bf16.mxu0 0
    %1587 = vmatpush1.bf16.msra.mxu0 %v731
    %1588 = vmatprep.subr.bf16.mxu0 0
    %1589 = vmatpush1.bf16.msra.mxu0 %v734
    %1590 = vmatprep.subr.bf16.mxu0 0
    %1591 = vmatpush1.bf16.msra.mxu0 %v737
    %1592 = vmatprep.subr.bf16.mxu0 0
    %1593 = vmatpush1.bf16.msra.mxu0 %v740
    %1594 = vmatprep.subr.bf16.mxu0 0
    %1595 = vmatpush1.bf16.msra.mxu0 %v743
    %1596 = vmatprep.subr.bf16.mxu0 0
    %1597 = vmatpush1.bf16.msra.mxu0 %v746
    %1598 = vmatprep.subr.bf16.mxu0 0
    %1599 = vmatpush1.bf16.msra.mxu0 0
    %1600 = vmatprep.subr.bf16.mxu0 0
    %1601 = vmatpush1.bf16.msra.mxu0 0
    %1602 = vmatprep.subr.bf16.mxu0 0
    %1603 = vmatpush1.bf16.msra.mxu0 0
    %1604 = vmatprep.subr.bf16.mxu0 0
    %1605 = vmatpush1.bf16.msra.mxu0 0
    %1606 = vmatprep.subr.bf16.mxu0 0
    %1607 = vmatpush1.bf16.msra.mxu0 0
    %1608 = vmatprep.subr.bf16.mxu0 0
    %1609 = vmatpush1.bf16.msra.mxu0 0
    %1610 = vmatprep.subr.bf16.mxu0 0
    %1611 = vmatpush1.bf16.msra.mxu0 0
    %1612 = vmatprep.subr.bf16.mxu0 0
    %1613 = vmatpush1.bf16.msra.mxu0 0
    %1614 = vmatprep.mubr.bf16.mxu0 0
    %1615 = vmatmul.mubr.bf16.gmra.mrb[0].mxu0 %v1540
    %v1616 = vpop.f32.mrb[0].mxu0
    %v1617 = vadd.f32 0.0, %v1616
    %v1618 = vpop.f32.mrb[0].mxu0
    %v1619 = vpop.f32.mrb[0].mxu0
    %v1620 = vpop.f32.mrb[0].mxu0
    %1621 = vdwg.mxu0
    %v1622 = vadd.f32 %v1537, %v1576
    %v1623 = vxor.u32 %v1622, 2147483648
    %v1624 = vmul.f32 %v1623, 1.442695
    %v1625 = vpow.pop %v1624
    %v1626 = vadd.f32 %v1625, 1.0
    %v1627 = vrcp.pop %v1626
    %v1628 = vmul.f32 1.0, %v1627
    %v1629 = vadd.f32 %v1538, %v1578
    %v1630 = vxor.u32 %v1629, 2147483648
    %v1631 = vmul.f32 %v1630, 1.442695
    %v1632 = vpow.pop %v1631
    %v1633 = vadd.f32 %v1632, 1.0
    %v1634 = vrcp.pop %v1633
    %v1635 = vmul.f32 1.0, %v1634
    %v1636 = vadd.f32 %v1617, %v635
    %v1637 = vmul.f32 %v1628, %v1636
    %v1638 = vadd.f32 %v1539, %v1637
    %v1639 = vtanh.pop %v1638
    %v1640 = vsub.f32 1.0, %v1635
    %v1641 = vmul.f32 %v1640, %v1639
    %v1642 = vmul.f32 %v1635, %v1533
    %v1643 = vadd.f32 %v1641, %v1642
    %v1644 = vpack.c.bf16 %v1643, %v1643
    %v1645 = vld [vmem:[#allocation8] sm:$0xf]
    %v1646 = vld [vmem:[#allocation8 + $0x4] sm:$0xf]
    %v1647 = vld [vmem:[#allocation8 + $0x8] sm:$0xf]
    %v1648 = vld [vmem:[#allocation8 + $0xc] sm:$0xf]
    %v1649 = vld [vmem:[#allocation8 + $0x10] sm:$0xf]
    %v1650 = vld [vmem:[#allocation8 + $0x14] sm:$0xf]
    %v1651 = vld [vmem:[#allocation8 + $0x18] sm:$0xf]
    %v1652 = vld [vmem:[#allocation8 + $0x1c] sm:$0xf]
    %v1653 = vld [vmem:[#allocation8 + $0x20] sm:$0xf]
    %v1654 = vld [vmem:[#allocation8 + $0x24] sm:$0xf]
    %v1655 = vld [vmem:[#allocation8 + $0x28] sm:$0xf]
    %v1656 = vld [vmem:[#allocation8 + $0x2c] sm:$0xf]
    %v1657 = vld [vmem:[#allocation8 + $0x30] sm:$0xf]
    %v1658 = vld [vmem:[#allocation8 + $0x34] sm:$0xf]
    %v1659 = vld [vmem:[#allocation8 + $0x38] sm:$0xf]
    %v1660 = vld [vmem:[#allocation8 + $0x3c] sm:$0xf]
    %v1661 = vld [vmem:[%s7] sm:$0x1]
    %v1663 = vlaneseq
    %v1664 = vshrl.u32 %v1663, 7
    %v1665 = vsub.s32 0, %v1664
    %v1666 = vrot.slane %v1661, %v1665
    %v1684 = vunpack.c.l.b16 %v1645
    %v1685 = vunpack.c.l.b16 %v1646
    %v1686 = vunpack.c.l.b16 %v1647
    %v1687 = vunpack.c.l.b16 %v1648
    %v1688 = vunpack.c.l.b16 %v1649
    %v1689 = vunpack.c.l.b16 %v1650
    %v1690 = vunpack.c.l.b16 %v1651
    %v1691 = vunpack.c.l.b16 %v1652
    %v1692 = vunpack.c.l.b16 %v1653
    %v1693 = vunpack.c.l.b16 %v1654
    %v1694 = vunpack.c.l.b16 %v1655
    %v1695 = vunpack.c.l.b16 %v1656
    %v1696 = vunpack.c.l.b16 %v1657
    %v1697 = vunpack.c.l.b16 %v1658
    %v1698 = vunpack.c.l.b16 %v1659
    %v1699 = vunpack.c.l.b16 %v1660
    %v1700 = vpack.c.b16 %v1685, %v1684
    %v1701 = vpack.c.b16 %v1687, %v1686
    %v1702 = vpack.c.b16 %v1689, %v1688
    %v1703 = vpack.c.b16 %v1691, %v1690
    %v1704 = vpack.c.b16 %v1693, %v1692
    %v1705 = vpack.c.b16 %v1695, %v1694
    %v1706 = vpack.c.b16 %v1697, %v1696
    %v1707 = vpack.c.b16 %v1699, %v1698
    %1716 = vmatprep.subr.bf16.mxu0 0
    %1717 = vmatpush1.bf16.msra.mxu0 %v1700
    %1718 = vmatprep.subr.bf16.mxu0 0
    %1719 = vmatpush1.bf16.msra.mxu0 %v1701
    %1720 = vmatprep.subr.bf16.mxu0 0
    %1721 = vmatpush1.bf16.msra.mxu0 %v1702
    %1722 = vmatprep.subr.bf16.mxu0 0
    %1723 = vmatpush1.bf16.msra.mxu0 %v1703
    %1724 = vmatprep.subr.bf16.mxu0 0
    %1725 = vmatpush1.bf16.msra.mxu0 %v1704
    %1726 = vmatprep.subr.bf16.mxu0 0
    %1727 = vmatpush1.bf16.msra.mxu0 %v1705
    %1728 = vmatprep.subr.bf16.mxu0 0
    %1729 = vmatpush1.bf16.msra.mxu0 %v1706
    %1730 = vmatprep.subr.bf16.mxu0 0
    %1731 = vmatpush1.bf16.msra.mxu0 %v1707
    %1732 = vmatprep.subr.bf16.mxu0 0
    %1733 = vmatpush1.bf16.msra.mxu0 0
    %1734 = vmatprep.subr.bf16.mxu0 0
    %1735 = vmatpush1.bf16.msra.mxu0 0
    %1736 = vmatprep.subr.bf16.mxu0 0
    %1737 = vmatpush1.bf16.msra.mxu0 0
    %1738 = vmatprep.subr.bf16.mxu0 0
    %1739 = vmatpush1.bf16.msra.mxu0 0
    %1740 = vmatprep.subr.bf16.mxu0 0
    %1741 = vmatpush1.bf16.msra.mxu0 0
    %1742 = vmatprep.subr.bf16.mxu0 0
    %1743 = vmatpush1.bf16.msra.mxu0 0
    %1744 = vmatprep.subr.bf16.mxu0 0
    %1745 = vmatpush1.bf16.msra.mxu0 0
    %1746 = vmatprep.subr.bf16.mxu0 0
    %1747 = vmatpush1.bf16.msra.mxu0 0
    %1748 = vmatprep.mubr.bf16.mxu0 0
    %1749 = vmatmul.mubr.bf16.gmra.mrb[0].mxu0 %v1644
    %v1750 = vpop.f32.mrb[0].mxu0
    %v1751 = vadd.f32 %v1666, %v1750
    %v1752 = vpop.f32.mrb[0].mxu0
    %v1753 = vpop.f32.mrb[0].mxu0
    %v1754 = vpop.f32.mrb[0].mxu0
    %1755 = vdwg.mxu0
    %1756 = vst [vmem:[#allocation9] sm:$0xff] %v1751
    // Predicated region
    $region46: #{tpu_custom_call.1} parent=1 // pred_check
      _
    $region47: #{tpu_custom_call.1} parent=1 // pred_check_branch
      %1758 = sbr.rel (0) target = $region49
    $region48: #{tpu_custom_call.1} parent=1 // pred_region
      %s1760 = ssub.s32 128, 128
      %1761 = vsyncadd [#allocation5], %s1760
      %s1763 = sshll.u32 [#allocation9], 4
      %s1764 = int_to_ptr.vmem [resolvable:$true] %s1763
      %1766 = dma.vmem_to_hbm [thread:$0]  %s1764, 128, %s8, [#allocation5]
    $region49: #{tpu_custom_call.1} parent=1 // pred_fallthru
      _
    // Predicated region
    $region50: #{tpu_custom_call.1} parent=1 // pred_check
      _
    $region51: #{tpu_custom_call.1} parent=1 // pred_check_branch
      %1768 = sbr.rel (0) target = $region53
    $region52: #{tpu_custom_call.1} parent=1 // pred_region
      %1769 = dma.done [#allocation5], 128
    $region53: #{tpu_custom_call.1} parent=1 // pred_fallthru
      _
    %1770 = vsyncpa [#allocation4], 1
    %1771 = vsyncpa [#allocation7], 1
    %1772 = vsyncpa [#allocation5], 1

</llo_original>
